<compile_context>
chip_gen: v6e
topology: v6e:2x2x1
jax: 0.10.0
libtpu: 0.0.40
codegen_flags: <defaults>
</compile_context>

<pallas_src>
import functools
import math

import numpy as np

import jax
import jax.numpy as jnp
from jax.experimental import pallas as pl
from jax.experimental.pallas import tpu as pltpu

PACK = 2  # batch elements packed per grid step


def _leaky(x, alpha):
    # alpha in (0, 1): max(x, alpha*x) == LeakyReLU(x)
    return jnp.maximum(x, alpha * x)


def _ppool_kernel(x_ref, wx_ref, p_ref, m_ref, u_ref, wbp_ref, b_ref, o_ref,
                  *, alpha, rows_feats):
    # x_ref:   (1, PACK*C_in, HW)       packed batch pair, lane axis = HW
    # wx_ref:  (PACK*(C_out+S), PACK*C_in)  stacked [wbx_bd ; ws_bd] (block-diag per batch)
    # p_ref:   (HW, Mpad)   bf16        block-average (avg-pool) matrix, all scales, padded
    # m_ref:   (PACK*S, Mpad)           row k keeps only the columns of row k's scale
    # u_ref:   (Mpad, HW)   bf16        nearest-upsample matrix, all scales, padded
    # wbp_ref: (PACK*C_out, PACK*S)     block-diag bottleneck weight, prior channels
    # b_ref:   (PACK*C_out, 1)          bottleneck bias, tiled per packed batch element
    # o_ref:   (1, PACK*C_out, HW)
    x = x_ref[0]                                                              # (PACK*C_in, HW)

    # Fused: bottleneck-passthrough rows and stage 1x1 conv rows share x -> one MXU push.
    fz = jnp.dot(wx_ref[...], x, preferred_element_type=jnp.float32)         # (PACK*(C_out+S), HW)
    yx = fz[:rows_feats]                                                      # (PACK*C_out, HW)
    z = fz[rows_feats:]                                                       # (PACK*S, HW)

    # Lossless bf16 constants -> f32 for the f32 accumulating dots.
    p = p_ref[...].astype(jnp.float32)                                        # (HW, Mpad)
    u = u_ref[...].astype(jnp.float32)                                        # (Mpad, HW)

    # Non-overlapping avg-pool for every scale at once (conv commutes with avg-pool).
    pooled = jnp.dot(z, p, preferred_element_type=jnp.float32)                # (PACK*S, Mpad)
    # LeakyReLU on pooled priors, then mask off cross-scale / padded columns.
    act = _leaky(pooled, alpha) * m_ref[...]                                  # (PACK*S, Mpad)
    # Nearest-neighbor upsample of every prior back to full resolution.
    priors = jnp.dot(act, u, preferred_element_type=jnp.float32)              # (PACK*S, HW)

    # Bottleneck 1x1 conv over concat([priors, feats]) = prior matmul + passthrough + bias.
    y = (jnp.dot(wbp_ref[...], priors, preferred_element_type=jnp.float32)
         + yx + b_ref[...])                                                   # (PACK*C_out, HW)
    o_ref[0] = _leaky(y, alpha).astype(o_ref.dtype)


@functools.lru_cache(maxsize=None)
def _build_pool_mats(H, W, scales, ct, pack):
    """Host-side (numpy, cached) constants:
       P (HW, Mpad) avg-pool, U (Mpad, HW) nearest-upsample, mask (pack*S, Mpad)."""
    HW = H * W
    M = sum((H // s) * (W // s) for s in scales)
    Mpad = max(128, ((M + 127) // 128) * 128)          # lane-dense pooled axis

    yy, xx = np.meshgrid(np.arange(H), np.arange(W), indexing="ij")
    pix_y = yy.reshape(-1)
    pix_x = xx.reshape(-1)

    P = np.zeros((HW, Mpad), np.float32)
    U = np.zeros((Mpad, HW), np.float32)
    col_scale = np.full((Mpad,), -1, np.int64)
    off = 0
    for si, s in enumerate(scales):
        Hs, Ws = H // s, W // s
        blk = (pix_y // s) * Ws + (pix_x // s)                                # (HW,)
        onehot = (blk[:, None] == np.arange(Hs * Ws)[None, :]).astype(np.float32)
        P[:, off:off + Hs * Ws] = onehot / float(s * s)
        U[off:off + Hs * Ws, :] = onehot.T
        col_scale[off:off + Hs * Ws] = si
        off += Hs * Ws

    row_scale = np.repeat(np.arange(len(scales)), ct)                          # (S,)
    mask = (row_scale[:, None] == col_scale[None, :]).astype(np.float32)       # (S, Mpad)
    mask = np.tile(mask, (pack, 1))                                            # (pack*S, Mpad)
    return P, U, mask


@functools.partial(jax.jit, static_argnames=("scales", "ct_channels", "alpha"))
def pyramid_pooling_forward(feats, stage_w, bottleneck_w, bottleneck_b,
                            scales=(4, 8, 16, 32), ct_channels=1, alpha=0.2):
    """feats: (N, C_in, H, W); stage_w: (len(scales)*ct, C_in);
       bottleneck_w: (C_out, C_in + len(scales)*ct); bottleneck_b: (C_out,)."""
    N, C_in, H, W = feats.shape
    S = len(scales) * ct_channels
    C_out = bottleneck_w.shape[0]
    assert bottleneck_w.shape == (C_out, C_in + S)
    for s in scales:
        assert H % s == 0 and W % s == 0, "scales must divide the spatial dims"
    HW = H * W

    # Cached numpy constants (trace-time only; embedded as compile-time constants).
    P_np, U_np, mask_np = _build_pool_mats(H, W, tuple(scales), ct_channels, PACK)
    Mpad = P_np.shape[1]
    P = jnp.asarray(P_np, jnp.bfloat16)      # lossless: entries 0/1 or exact 1/s^2
    U = jnp.asarray(U_np, jnp.bfloat16)
    mask = jnp.asarray(mask_np, jnp.float32)

    # Pad batch to a multiple of PACK, then free contiguous reshape: 2 batch elements
    # become one (PACK*C_in, HW) slab per grid step. No transpose / spatial pad anywhere.
    Np = ((N + PACK - 1) // PACK) * PACK
    x = feats.astype(jnp.float32)
    if Np != N:
        x = jnp.concatenate([x, jnp.zeros((Np - N, C_in, H, W), jnp.float32)], axis=0)
    x_flat = x.reshape(Np // PACK, PACK * C_in, HW)

    # Weights: split bottleneck into priors / passthrough parts, block-diagonalize per
    # packed batch element, and stack [wbx_bd ; ws_bd] so they share a single dot with x.
    ws = stage_w.reshape(S, C_in).astype(jnp.float32)
    wb_p = bottleneck_w[:, :S].astype(jnp.float32)      # concat order is [priors..., feats]
    wb_x = bottleneck_w[:, S:].astype(jnp.float32)
    eye = jnp.eye(PACK, dtype=jnp.float32)
    ws_bd = jnp.kron(eye, ws)                            # (PACK*S,    PACK*C_in)
    wbx_bd = jnp.kron(eye, wb_x)                         # (PACK*C_out, PACK*C_in)
    wbp_bd = jnp.kron(eye, wb_p)                         # (PACK*C_out, PACK*S)
    wx = jnp.concatenate([wbx_bd, ws_bd], axis=0)        # (PACK*(C_out+S), PACK*C_in)
    b_pk = jnp.tile(bottleneck_b.astype(jnp.float32), PACK).reshape(PACK * C_out, 1)

    kernel = functools.partial(_ppool_kernel, alpha=alpha, rows_feats=PACK * C_out)

    out_flat = pl.pallas_call(
        kernel,
        out_shape=jax.ShapeDtypeStruct((Np // PACK, PACK * C_out, HW), feats.dtype),
        grid_spec=pltpu.PrefetchScalarGridSpec(
            num_scalar_prefetch=0,
            grid=(Np // PACK,),                          # one packed batch pair per step
            in_specs=[
                pl.BlockSpec((1, PACK * C_in, HW), lambda n: (n, 0, 0)),
                pl.BlockSpec((PACK * (C_out + S), PACK * C_in), lambda n: (0, 0)),
                pl.BlockSpec((HW, Mpad), lambda n: (0, 0)),
                pl.BlockSpec((PACK * S, Mpad), lambda n: (0, 0)),
                pl.BlockSpec((Mpad, HW), lambda n: (0, 0)),
                pl.BlockSpec((PACK * C_out, PACK * S), lambda n: (0, 0)),
                pl.BlockSpec((PACK * C_out, 1), lambda n: (0, 0)),
            ],
            out_specs=pl.BlockSpec((1, PACK * C_out, HW), lambda n: (n, 0, 0)),
        ),
        compiler_params=pltpu.CompilerParams(dimension_semantics=("parallel",)),
    )(x_flat, wx, P, mask, U, wbp_bd, b_pk)

    out = out_flat.reshape(Np, C_out, H, W)
    return out[:N]


def pyramid_pooling_ref(feats, stage_w, wb, bb, scales=(4, 8, 16, 32),
                        ct_channels=1, alpha=0.2):
    """Pure-JAX reference mirroring the PyTorch forward (pool -> 1x1 conv -> lrelu ->
       nearest upsample -> concat with feats -> 1x1 conv + bias -> lrelu)."""
    N, C, H, W = feats.shape
    priors = []
    for k, s in enumerate(scales):
        w = stage_w[k * ct_channels:(k + 1) * ct_channels]          # (ct, C)
        pooled = feats.reshape(N, C, H // s, s, W // s, s).mean(axis=(3, 5))
        c = jnp.einsum("nchw,kc->nkhw", pooled, w)
        c = jnp.where(c > 0, c, alpha * c)
        c = jnp.repeat(jnp.repeat(c, s, axis=2), s, axis=3)         # nearest upsample
        priors.append(c)
    cat = jnp.concatenate(priors + [feats], axis=1)
    y = jnp.einsum("nchw,oc->nohw", cat, wb) + bb.reshape(1, -1, 1, 1)
    return jnp.where(y > 0, y, alpha * y)


if __name__ == "__main__":
    # Module config: PyramidPooling(in_channels=4, out_channels=8,
    #                               scales=(4, 8, 16, 32), ct_channels=1)
    # Spatial size must be divisible by the largest scale (32).
    in_channels, out_channels = 4, 8
    scales, ct = (4, 8, 16, 32), 1
    N, H, W = 2, 32, 32
    S = len(scales) * ct

    key = jax.random.PRNGKey(0)
    k_x, k_sw, k_bw, k_bb = jax.random.split(key, 4)

    # Deterministic init matching _ConvNd.reset_parameters: U(-stdv, stdv), stdv=1/sqrt(fan_in)
    stdv_stage = 1.0 / math.sqrt(in_channels * 1 * 1)
    stage_w = jax.random.uniform(k_sw, (S, in_channels), jnp.float32,
                                 minval=-stdv_stage, maxval=stdv_stage)
    stdv_bn = 1.0 / math.sqrt((in_channels + S) * 1 * 1)
    bottleneck_w = jax.random.uniform(k_bw, (out_channels, in_channels + S), jnp.float32,
                                      minval=-stdv_bn, maxval=stdv_bn)
    bottleneck_b = jax.random.uniform(k_bb, (out_channels,), jnp.float32,
                                      minval=-stdv_bn, maxval=stdv_bn)
    feats = jax.random.normal(k_x, (N, in_channels, H, W), jnp.float32)

    out = pyramid_pooling_forward(feats, stage_w, bottleneck_w, bottleneck_b,
                                  scales=scales, ct_channels=ct, alpha=0.2)
    out = jax.block_until_ready(out)
    assert out.shape == (N, out_channels, H, W), out.shape

    ref = pyramid_pooling_ref(feats, stage_w, bottleneck_w, bottleneck_b,
                              scales=scales, ct_channels=ct, alpha=0.2)
    ref = jax.block_until_ready(ref)
    err = float(jnp.max(jnp.abs(out - ref)))
    assert jnp.allclose(out, ref, rtol=1e-4, atol=1e-4), err

    print("KERNEL_OK")
</pallas_src>

<mosaic_0001>
module attributes {stable_mosaic.version = 11 : i64} {
  func.func @_ppool_kernel(%arg0: i32, %arg1: memref<1x8x1024xf32, #tpu.memory_space<vmem>>, %arg2: memref<24x8xf32, #tpu.memory_space<vmem>>, %arg3: memref<1024x128xbf16, #tpu.memory_space<vmem>>, %arg4: memref<8x128xf32, #tpu.memory_space<vmem>>, %arg5: memref<128x1024xbf16, #tpu.memory_space<vmem>>, %arg6: memref<16x8xf32, #tpu.memory_space<vmem>>, %arg7: memref<16x1xf32, #tpu.memory_space<vmem>>, %arg8: memref<1x16x1024xf32, #tpu.memory_space<vmem>>) attributes {dimension_semantics = [#tpu.dimension_semantics<parallel>], iteration_bounds = array<i64: 1>, scalar_prefetch = 0 : i64, scratch_operands = 0 : i64, tpu.core_type = #tpu.core_type<tc>, window_params = [{transform_indices = @transform_0, window_bounds = array<i64: 1, 8, 1024>}, {pipeline_mode = #tpu.pipeline_mode<synchronous>, transform_indices = @transform_1, window_bounds = array<i64: 24, 8>}, {pipeline_mode = #tpu.pipeline_mode<synchronous>, transform_indices = @transform_2, window_bounds = array<i64: 1024, 128>}, {pipeline_mode = #tpu.pipeline_mode<synchronous>, transform_indices = @transform_3, window_bounds = array<i64: 8, 128>}, {pipeline_mode = #tpu.pipeline_mode<synchronous>, transform_indices = @transform_4, window_bounds = array<i64: 128, 1024>}, {pipeline_mode = #tpu.pipeline_mode<synchronous>, transform_indices = @transform_5, window_bounds = array<i64: 16, 8>}, {pipeline_mode = #tpu.pipeline_mode<synchronous>, transform_indices = @transform_6, window_bounds = array<i64: 16, 1>}, {transform_indices = @transform_7, window_bounds = array<i64: 1, 16, 1024>}]} {
    %c0 = arith.constant 0 : index
    %c0_0 = arith.constant 0 : index
    %c0_1 = arith.constant 0 : index
    %0 = vector.load %arg1[%c0, %c0_0, %c0_1] : memref<1x8x1024xf32, #tpu.memory_space<vmem>>, vector<1x8x1024xf32>
    %1 = vector.shape_cast %0 : vector<1x8x1024xf32> to vector<8x1024xf32>
    %c0_2 = arith.constant 0 : index
    %c0_3 = arith.constant 0 : index
    %2 = vector.load %arg2[%c0_2, %c0_3] : memref<24x8xf32, #tpu.memory_space<vmem>>, vector<24x8xf32>
    %cst = arith.constant dense<0.000000e+00> : vector<24x1024xf32>
    %3 = tpu.matmul %2, %1, %cst {dimension_numbers = #tpu.dot_dimension_numbers<[1], [0], [0], [1], [0, 0, 1, 1], [], []>} : vector<24x8xf32>, vector<8x1024xf32>, vector<24x1024xf32> -> vector<24x1024xf32>
    %4 = vector.extract_strided_slice %3 {offsets = [0, 0], sizes = [16, 1024], strides = [1, 1]} : vector<24x1024xf32> to vector<16x1024xf32>
    %5 = vector.extract_strided_slice %3 {offsets = [16, 0], sizes = [8, 1024], strides = [1, 1]} : vector<24x1024xf32> to vector<8x1024xf32>
    %c0_4 = arith.constant 0 : index
    %c0_5 = arith.constant 0 : index
    %6 = vector.load %arg3[%c0_4, %c0_5] : memref<1024x128xbf16, #tpu.memory_space<vmem>>, vector<1024x128xbf16>
    %7 = arith.extf %6 : vector<1024x128xbf16> to vector<1024x128xf32>
    %c0_6 = arith.constant 0 : index
    %c0_7 = arith.constant 0 : index
    %8 = vector.load %arg5[%c0_6, %c0_7] : memref<128x1024xbf16, #tpu.memory_space<vmem>>, vector<128x1024xbf16>
    %9 = arith.extf %8 : vector<128x1024xbf16> to vector<128x1024xf32>
    %cst_8 = arith.constant dense<0.000000e+00> : vector<8x128xf32>
    %10 = tpu.matmul %5, %7, %cst_8 {dimension_numbers = #tpu.dot_dimension_numbers<[1], [0], [0], [1], [0, 0, 1, 1], [], []>} : vector<8x1024xf32>, vector<1024x128xf32>, vector<8x128xf32> -> vector<8x128xf32>
    %cst_9 = arith.constant 2.000000e-01 : f32
    %11 = vector.broadcast %cst_9 : f32 to vector<8x128xf32>
    %12 = arith.mulf %11, %10 : vector<8x128xf32>
    %13 = arith.maximumf %10, %12 : vector<8x128xf32>
    %c0_10 = arith.constant 0 : index
    %c0_11 = arith.constant 0 : index
    %14 = vector.load %arg4[%c0_10, %c0_11] : memref<8x128xf32, #tpu.memory_space<vmem>>, vector<8x128xf32>
    %15 = arith.mulf %13, %14 : vector<8x128xf32>
    %cst_12 = arith.constant dense<0.000000e+00> : vector<8x1024xf32>
    %16 = tpu.matmul %15, %9, %cst_12 {dimension_numbers = #tpu.dot_dimension_numbers<[1], [0], [0], [1], [0, 0, 1, 1], [], []>} : vector<8x128xf32>, vector<128x1024xf32>, vector<8x1024xf32> -> vector<8x1024xf32>
    %c0_13 = arith.constant 0 : index
    %c0_14 = arith.constant 0 : index
    %17 = vector.load %arg6[%c0_13, %c0_14] : memref<16x8xf32, #tpu.memory_space<vmem>>, vector<16x8xf32>
    %cst_15 = arith.constant dense<0.000000e+00> : vector<16x1024xf32>
    %18 = tpu.matmul %17, %16, %cst_15 {dimension_numbers = #tpu.dot_dimension_numbers<[1], [0], [0], [1], [0, 0, 1, 1], [], []>} : vector<16x8xf32>, vector<8x1024xf32>, vector<16x1024xf32> -> vector<16x1024xf32>
    %19 = arith.addf %18, %4 : vector<16x1024xf32>
    %c0_16 = arith.constant 0 : index
    %c0_17 = arith.constant 0 : index
    %20 = vector.load %arg7[%c0_16, %c0_17] : memref<16x1xf32, #tpu.memory_space<vmem>>, vector<16x1xf32>
    %21 = vector.broadcast %20 : vector<16x1xf32> to vector<16x1024xf32>
    %22 = arith.addf %19, %21 : vector<16x1024xf32>
    %cst_18 = arith.constant 2.000000e-01 : f32
    %23 = vector.broadcast %cst_18 : f32 to vector<16x1024xf32>
    %24 = arith.mulf %23, %22 : vector<16x1024xf32>
    %25 = arith.maximumf %22, %24 : vector<16x1024xf32>
    %c0_19 = arith.constant 0 : index
    %c0_20 = arith.constant 0 : index
    %c0_21 = arith.constant 0 : index
    %26 = vector.load %arg8[%c0_19, %c0_20, %c0_21] : memref<1x16x1024xf32, #tpu.memory_space<vmem>>, vector<1x16x1024xf32>
    %27 = vector.shape_cast %26 : vector<1x16x1024xf32> to vector<16x1024xf32>
    %28 = vector.shape_cast %25 : vector<16x1024xf32> to vector<1x16x1024xf32>
    tpu.vector_store %arg8[%c0_19, %c0_20, %c0_21], %28 {strides = array<i32>} : memref<1x16x1024xf32, #tpu.memory_space<vmem>>, vector<1x16x1024xf32>,
    return
  }
  func.func @transform_0(%arg0: i32) -> (i32, i32, i32) {
    %c0_i32 = arith.constant 0 : i32
    %c0_i32_0 = arith.constant 0 : i32
    %c0_i32_1 = arith.constant 0 : i32
    return %arg0, %c0_i32, %c0_i32_0 : i32, i32, i32
  }
  func.func @transform_1(%arg0: i32) -> (i32, i32) {
    %c0_i32 = arith.constant 0 : i32
    %c0_i32_0 = arith.constant 0 : i32
    %c0_i32_1 = arith.constant 0 : i32
    return %c0_i32, %c0_i32_0 : i32, i32
  }
  func.func @transform_2(%arg0: i32) -> (i32, i32) {
    %c0_i32 = arith.constant 0 : i32
    %c0_i32_0 = arith.constant 0 : i32
    %c0_i32_1 = arith.constant 0 : i32
    return %c0_i32, %c0_i32_0 : i32, i32
  }
  func.func @transform_3(%arg0: i32) -> (i32, i32) {
    %c0_i32 = arith.constant 0 : i32
    %c0_i32_0 = arith.constant 0 : i32
    %c0_i32_1 = arith.constant 0 : i32
    return %c0_i32, %c0_i32_0 : i32, i32
  }
  func.func @transform_4(%arg0: i32) -> (i32, i32) {
    %c0_i32 = arith.constant 0 : i32
    %c0_i32_0 = arith.constant 0 : i32
    %c0_i32_1 = arith.constant 0 : i32
    return %c0_i32, %c0_i32_0 : i32, i32
  }
  func.func @transform_5(%arg0: i32) -> (i32, i32) {
    %c0_i32 = arith.constant 0 : i32
    %c0_i32_0 = arith.constant 0 : i32
    %c0_i32_1 = arith.constant 0 : i32
    return %c0_i32, %c0_i32_0 : i32, i32
  }
  func.func @transform_6(%arg0: i32) -> (i32, i32) {
    %c0_i32 = arith.constant 0 : i32
    %c0_i32_0 = arith.constant 0 : i32
    %c0_i32_1 = arith.constant 0 : i32
    return %c0_i32, %c0_i32_0 : i32, i32
  }
  func.func @transform_7(%arg0: i32) -> (i32, i32, i32) {
    %c0_i32 = arith.constant 0 : i32
    %c0_i32_0 = arith.constant 0 : i32
    %c0_i32_1 = arith.constant 0 : i32
    return %arg0, %c0_i32, %c0_i32_0 : i32, i32, i32
  }
}

</mosaic_0001>

<llo_original>
// kernel: tile.0
$region0: #{tile.0}
  %s0 = inlined_call_operand.vmem [shape: f32[2,8], index: 0, kind: input, shape index: {}]
  %s1 = inlined_call_operand.vmem [shape: f32[16,1], index: 1, kind: output, shape index: {}]
  $region1: #{tile.0} parent=0
    #allocation0 [shape = 'u8[4096]{0}', space=vmem, size = 0x1000, scoped, tag = 'scoped mem for input reshape']
    %s3 = sshll.u32 1, 2
    %s4 = ssub.s32 %s3, 1
    %v5 = vld [vmem:[%s0] sm:%s4]
    %6 = vst [vmem:[#allocation0] sm:%s4] %v5
    %v7 = vld [vmem:[#allocation0] sm:$0x3]
    %vm8 = vcmask 7168
    %9 = vst.msk [vmem:[%s1] ss:$8 sm:$0x3] %vm8, %v7
    %v10 = vld [vmem:[#allocation0] sm:$0x3]
    %11 = vrot.lane.b32.xlu0 %v10, 127
    %v12 = vpop.permute.xlu0 %11
    %vm13 = vcmask 7168
    %s14 = scalar_lea.vmem %s1, 1
    %15 = vst.msk [vmem:[%s14] ss:$8 sm:$0x3] %vm13, %v12
    %v16 = vld [vmem:[#allocation0] sm:$0x3]
    %17 = vrot.lane.b32.xlu0 %v16, 126
    %v18 = vpop.permute.xlu0 %17
    %vm19 = vcmask 7168
    %s20 = scalar_lea.vmem %s1, 2
    %21 = vst.msk [vmem:[%s20] ss:$8 sm:$0x3] %vm19, %v18
    %v22 = vld [vmem:[#allocation0] sm:$0x3]
    %23 = vrot.lane.b32.xlu0 %v22, 125
    %v24 = vpop.permute.xlu0 %23
    %vm25 = vcmask 7168
    %s26 = scalar_lea.vmem %s1, 3
    %27 = vst.msk [vmem:[%s26] ss:$8 sm:$0x3] %vm25, %v24
    %v28 = vld [vmem:[#allocation0] sm:$0x3]
    %29 = vrot.lane.b32.xlu0 %v28, 124
    %v30 = vpop.permute.xlu0 %29
    %vm31 = vcmask 7168
    %s32 = scalar_lea.vmem %s1, 4
    %33 = vst.msk [vmem:[%s32] ss:$8 sm:$0x3] %vm31, %v30
    %v34 = vld [vmem:[#allocation0] sm:$0x3]
    %35 = vrot.lane.b32.xlu0 %v34, 123
    %v36 = vpop.permute.xlu0 %35
    %vm37 = vcmask 7168
    %s38 = scalar_lea.vmem %s1, 5
    %39 = vst.msk [vmem:[%s38] ss:$8 sm:$0x3] %vm37, %v36
    %v40 = vld [vmem:[#allocation0] sm:$0x3]
    %41 = vrot.lane.b32.xlu0 %v40, 122
    %v42 = vpop.permute.xlu0 %41
    %vm43 = vcmask 7168
    %s44 = scalar_lea.vmem %s1, 6
    %45 = vst.msk [vmem:[%s44] ss:$8 sm:$0x3] %vm43, %v42
    %v46 = vld [vmem:[#allocation0] sm:$0x3]
    %47 = vrot.lane.b32.xlu0 %v46, 121
    %v48 = vpop.permute.xlu0 %47
    %vm49 = vcmask 7168
    %s50 = scalar_lea.vmem %s1, 7
    %51 = vst.msk [vmem:[%s50] ss:$8 sm:$0x3] %vm49, %v48

// kernel: tile.8
$region0: #{tile.8}
  #allocation2 [shape = 's32[1]{0}', space=sflag, size = 0x4, scoped, tag = 'scoped memory for tile.8']
  %s0 = inlined_call_operand.hbm [shape: f32[8], index: 0, kind: input, shape index: {}]
  %s1 = inlined_call_operand.vmem [shape: f32[2,8], index: 1, kind: output, shape index: {}]
  $region1: #{tile.8} parent=0
    #allocation0 [shape = 'u8[512]{0}', space=vmem, size = 0x400, scoped, tag = 'operand span for operand 0']
    #allocation1 [shape = 's32[1]{0}', space=sflag, size = 0x4, scoped, tag = 'scoped memory for tile.8']
    %2 = vsyncpa [#allocation1], 0
    // Predicated region
    $region2: #{tile.8} parent=1 // pred_check
      _
    $region3: #{tile.8} parent=1 // pred_check_branch
      %4 = sbr.rel (0) target = $region5
    $region4: #{tile.8} parent=1 // pred_region
      %s6 = ssub.s32 16, 16
      %7 = vsyncadd [#allocation1], %s6
      %s9 = sshll.u32 [#allocation0], 4
      %s10 = int_to_ptr.vmem [resolvable:$true] %s9
      %12 = dma.hbm_to_vmem [thread:$0]  %s0, 16, %s10, [#allocation1]
    $region5: #{tile.8} parent=1 // pred_fallthru
      _
    // Predicated region
    $region6: #{tile.8} parent=1 // pred_check
      _
    $region7: #{tile.8} parent=1 // pred_check_branch
      %14 = sbr.rel (0) target = $region9
    $region8: #{tile.8} parent=1 // pred_region
      %15 = dma.done [#allocation1], 16
    $region9: #{tile.8} parent=1 // pred_fallthru
      _
    %v16 = vld [vmem:[#allocation0] ss:$0 sm:$0xff]
    %17 = vst [vmem:[%s1] sm:$0x3] %v16
    %18 = vsyncpa [#allocation1], 1

// kernel: pyramid_pooling_forward.1
$region0: #{pyramid_pooling_forward.1}
  #allocation0 [shape = 'u32[]', space=smem, size = 0x4, offset = 0x4, fixed_abs, tag = 'smem constant byte address 0x4 - core index']
  #allocation1 [shape = 'u32[144,128]{1,0:T(1,128)}', space=vmem, size = 0x12000, scoped, tag = 'internal scratch']
  %s0 = inlined_call_operand.vmem [shape: f32[1,8,1024], index: 0, kind: input, shape index: {}]
  %s1 = inlined_call_operand.vmem [shape: f32[24,8], index: 1, kind: input, shape index: {}]
  %s2 = inlined_call_operand.hbm [shape: bf16[1024,128], index: 2, kind: input, shape index: {}]
  %s3 = inlined_call_operand.vmem [shape: f32[8,128], index: 3, kind: input, shape index: {}]
  %s4 = inlined_call_operand.vmem [shape: bf16[128,1024], index: 4, kind: input, shape index: {}]
  %s5 = inlined_call_operand.vmem [shape: f32[16,8], index: 5, kind: input, shape index: {}]
  %s6 = inlined_call_operand.vmem [shape: f32[16,1], index: 6, kind: input, shape index: {}]
  %s7 = inlined_call_operand.vmem [shape: f32[1,16,1024], index: 7, kind: output, shape index: {}]
  %s8 = sld [smem:[#allocation0]]
  $region42: #{pyramid_pooling_forward.1} parent=0
    _
  %s10 = ssub.s32 1, %s8
  %s11 = scalar_select 0, %s10, %s8
  $region1: #{pyramid_pooling_forward.1} parent=0
    #allocation2 [shape = 'u8[262144]{0}', space=vmem, size = 0x40000, scoped, tag = 'input window, operand 2, single buffered']
    #allocation3 [shape = 's32[1]{0}', space=sflag, size = 0x4, scoped, tag = 'scoped memory for pyramid_pooling_forward.1']
    %12 = vsyncpa [#allocation3], 0
    // Predicated region
    $region2: #{pyramid_pooling_forward.1} parent=1 // pred_check
      _
    $region3: #{pyramid_pooling_forward.1} parent=1 // pred_check_branch
      %14 = sbr.rel (0) target = $region5
    $region4: #{pyramid_pooling_forward.1} parent=1 // pred_region
      _
    $region5: #{pyramid_pooling_forward.1} parent=1 // pred_fallthru
      _
    // Predicated region
    $region6: #{pyramid_pooling_forward.1} parent=1 // pred_check
      _
    $region7: #{pyramid_pooling_forward.1} parent=1 // pred_check_branch
      %16 = sbr.rel (0) target = $region9
    $region8: #{pyramid_pooling_forward.1} parent=1 // pred_region
      _
    $region9: #{pyramid_pooling_forward.1} parent=1 // pred_fallthru
      _
    // Predicated region
    $region10: #{pyramid_pooling_forward.1} parent=1 // pred_check
      _
    $region11: #{pyramid_pooling_forward.1} parent=1 // pred_check_branch
      %18 = sbr.rel (0) target = $region13
    $region12: #{pyramid_pooling_forward.1} parent=1 // pred_region
      %s20 = ssub.s32 8192, 8192
      %21 = vsyncadd [#allocation3], %s20
      %s22 = sshll.u32 [#allocation2], 4
      %s23 = int_to_ptr.vmem [resolvable:$true] %s22
      %28 = dma.hbm_to_vmem [thread:$0]  %s2, 8192, %s23, [#allocation3], 64, 64, 4
    $region13: #{pyramid_pooling_forward.1} parent=1 // pred_fallthru
      _
    // Predicated region
    $region14: #{pyramid_pooling_forward.1} parent=1 // pred_check
      _
    $region15: #{pyramid_pooling_forward.1} parent=1 // pred_check_branch
      %30 = sbr.rel (0) target = $region17
    $region16: #{pyramid_pooling_forward.1} parent=1 // pred_region
      _
    $region17: #{pyramid_pooling_forward.1} parent=1 // pred_fallthru
      _
    // Predicated region
    $region18: #{pyramid_pooling_forward.1} parent=1 // pred_check
      _
    $region19: #{pyramid_pooling_forward.1} parent=1 // pred_check_branch
      %32 = sbr.rel (0) target = $region21
    $region20: #{pyramid_pooling_forward.1} parent=1 // pred_region
      _
    $region21: #{pyramid_pooling_forward.1} parent=1 // pred_fallthru
      _
    // Predicated region
    $region22: #{pyramid_pooling_forward.1} parent=1 // pred_check
      _
    $region23: #{pyramid_pooling_forward.1} parent=1 // pred_check_branch
      %34 = sbr.rel (0) target = $region25
    $region24: #{pyramid_pooling_forward.1} parent=1 // pred_region
      _
    $region25: #{pyramid_pooling_forward.1} parent=1 // pred_fallthru
      _
    // Predicated region
    $region26: #{pyramid_pooling_forward.1} parent=1 // pred_check
      _
    $region27: #{pyramid_pooling_forward.1} parent=1 // pred_check_branch
      %36 = sbr.rel (0) target = $region29
    $region28: #{pyramid_pooling_forward.1} parent=1 // pred_region
      _
    $region29: #{pyramid_pooling_forward.1} parent=1 // pred_fallthru
      _
    // Predicated region
    $region30: #{pyramid_pooling_forward.1} parent=1 // pred_check
      _
    $region31: #{pyramid_pooling_forward.1} parent=1 // pred_check_branch
      %38 = sbr.rel (0) target = $region33
    $region32: #{pyramid_pooling_forward.1} parent=1 // pred_region
      %39 = dma.done [#allocation3], 8192
    $region33: #{pyramid_pooling_forward.1} parent=1 // pred_fallthru
      _
    %v40 = vld [vmem:[%s0] sm:$0xff]
    %v41 = vld [vmem:[%s0 + $0x8] sm:$0xff]
    %v42 = vld [vmem:[%s0 + $0x10] sm:$0xff]
    %v43 = vld [vmem:[%s0 + $0x18] sm:$0xff]
    %v44 = vld [vmem:[%s0 + $0x20] sm:$0xff]
    %v45 = vld [vmem:[%s0 + $0x28] sm:$0xff]
    %v46 = vld [vmem:[%s0 + $0x30] sm:$0xff]
    %v47 = vld [vmem:[%s0 + $0x38] sm:$0xff]
    %v48 = vld [vmem:[%s1] sm:$0xff]
    %v49 = vld [vmem:[%s1 + $0x8] sm:$0xff]
    %v50 = vld [vmem:[%s1 + $0x10] sm:$0xff]
    %vm51 = vcmask 64512
    %v53 = vsel %vm51, %v48, 0
    %v56 = vsel %vm51, %v49, 0
    %v59 = vsel %vm51, %v50, 0
    %61 = vmatprep.subr.mxu0 0.0
    %62 = vmatpush1.msra.mxu0 0.0
    %63 = vmatprep.subr.mxu0 0.0
    %64 = vmatpush1.msra.mxu0 0.0
    %65 = vmatprep.subr.mxu0 0.0
    %66 = vmatpush1.msra.mxu0 0.0
    %67 = vmatprep.subr.mxu0 0.0
    %68 = vmatpush1.msra.mxu0 0.0
    %69 = vmatprep.subr.mxu0 0.0
    %70 = vmatpush1.msra.mxu0 0.0
    %71 = vmatprep.subr.mxu0 0.0
    %72 = vmatpush1.msra.mxu0 0.0
    %73 = vmatprep.subr.mxu0 0.0
    %74 = vmatpush1.msra.mxu0 0.0
    %75 = vmatprep.subr.mxu0 0.0
    %76 = vmatpush1.msra.mxu0 0.0
    %77 = vmatprep.subr.mxu0 0.0
    %78 = vmatpush1.msra.mxu0 0.0
    %79 = vmatprep.subr.mxu0 0.0
    %80 = vmatpush1.msra.mxu0 0.0
    %81 = vmatprep.subr.mxu0 0.0
    %82 = vmatpush1.msra.mxu0 0.0
    %83 = vmatprep.subr.mxu0 0.0
    %84 = vmatpush1.msra.mxu0 0.0
    %85 = vmatprep.subr.mxu0 0.0
    %86 = vmatpush1.msra.mxu0 0.0
    %87 = vmatprep.subr.mxu0 0.0
    %88 = vmatpush1.msra.mxu0 0.0
    %89 = vmatprep.subr.mxu0 0.0
    %90 = vmatpush1.msra.mxu0 0.0
    %91 = vmatprep.subr.mxu0 %v41
    %92 = vmatpush1.msra.mxu0 %v40
    %93 = vmatprep.subr.mxu0 0.0
    %94 = vmatpush2.msra.mxu0 0.0
    %95 = vmatprep.subr.mxu0 0.0
    %96 = vmatpush2.msra.mxu0 0.0
    %97 = vmatprep.subr.mxu0 0.0
    %98 = vmatpush2.msra.mxu0 0.0
    %99 = vmatprep.subr.mxu0 0.0
    %100 = vmatpush2.msra.mxu0 0.0
    %101 = vmatprep.subr.mxu0 0.0
    %102 = vmatpush2.msra.mxu0 0.0
    %103 = vmatprep.subr.mxu0 0.0
    %104 = vmatpush2.msra.mxu0 0.0
    %105 = vmatprep.subr.mxu0 0.0
    %106 = vmatpush2.msra.mxu0 0.0
    %107 = vmatprep.subr.mxu0 0.0
    %108 = vmatpush2.msra.mxu0 0.0
    %109 = vmatprep.subr.mxu0 0.0
    %110 = vmatpush2.msra.mxu0 0.0
    %111 = vmatprep.subr.mxu0 0.0
    %112 = vmatpush2.msra.mxu0 0.0
    %113 = vmatprep.subr.mxu0 0.0
    %114 = vmatpush2.msra.mxu0 0.0
    %115 = vmatprep.subr.mxu0 0.0
    %116 = vmatpush2.msra.mxu0 0.0
    %117 = vmatprep.subr.mxu0 0.0
    %118 = vmatpush2.msra.mxu0 0.0
    %119 = vmatprep.subr.mxu0 0.0
    %120 = vmatpush2.msra.mxu0 0.0
    %121 = vmatprep.subr.mxu0 0.0
    %122 = vmatpush2.msra.mxu0 0.0
    %123 = vmatprep.subr.mxu0 0.0
    %124 = vmatpush2.msra.mxu0 0.0
    %125 = vmatprep.mubr.f32.mxu0 0.0
    %126 = vmatmul.mubr.f32.gmra.mxu0 %v53
    %v127 = vpop.f32.mrf.mxu0
    %v128 = vadd.f32 0.0, %v127
    %v129 = vpop.f32.mrf.mxu0
    %v130 = vadd.f32 0.0, %v129
    %131 = vmatprep.mubr.f32.mxu0 0.0
    %132 = vmatmul.mubr.f32.gmra.mxu0 %v56
    %v133 = vpop.f32.mrf.mxu0
    %v134 = vadd.f32 0.0, %v133
    %v135 = vpop.f32.mrf.mxu0
    %v136 = vadd.f32 0.0, %v135
    %137 = vmatprep.mubr.f32.mxu0 0.0
    %138 = vmatmul.mubr.f32.gmra.mxu0 %v59
    %v139 = vpop.f32.mrf.mxu0
    %v140 = vadd.f32 0.0, %v139
    %v141 = vpop.f32.mrf.mxu0
    %v142 = vadd.f32 0.0, %v141
    %143 = vdwg.mxu0
    %144 = vmatprep.subr.mxu0 0.0
    %145 = vmatpush1.msra.mxu0 0.0
    %146 = vmatprep.subr.mxu0 0.0
    %147 = vmatpush1.msra.mxu0 0.0
    %148 = vmatprep.subr.mxu0 0.0
    %149 = vmatpush1.msra.mxu0 0.0
    %150 = vmatprep.subr.mxu0 0.0
    %151 = vmatpush1.msra.mxu0 0.0
    %152 = vmatprep.subr.mxu0 0.0
    %153 = vmatpush1.msra.mxu0 0.0
    %154 = vmatprep.subr.mxu0 0.0
    %155 = vmatpush1.msra.mxu0 0.0
    %156 = vmatprep.subr.mxu0 0.0
    %157 = vmatpush1.msra.mxu0 0.0
    %158 = vmatprep.subr.mxu0 0.0
    %159 = vmatpush1.msra.mxu0 0.0
    %160 = vmatprep.subr.mxu0 0.0
    %161 = vmatpush1.msra.mxu0 0.0
    %162 = vmatprep.subr.mxu0 0.0
    %163 = vmatpush1.msra.mxu0 0.0
    %164 = vmatprep.subr.mxu0 0.0
    %165 = vmatpush1.msra.mxu0 0.0
    %166 = vmatprep.subr.mxu0 0.0
    %167 = vmatpush1.msra.mxu0 0.0
    %168 = vmatprep.subr.mxu0 0.0
    %169 = vmatpush1.msra.mxu0 0.0
    %170 = vmatprep.subr.mxu0 0.0
    %171 = vmatpush1.msra.mxu0 0.0
    %172 = vmatprep.subr.mxu0 0.0
    %173 = vmatpush1.msra.mxu0 0.0
    %174 = vmatprep.subr.mxu0 %v43
    %175 = vmatpush1.msra.mxu0 %v42
    %176 = vmatprep.subr.mxu0 0.0
    %177 = vmatpush2.msra.mxu0 0.0
    %178 = vmatprep.subr.mxu0 0.0
    %179 = vmatpush2.msra.mxu0 0.0
    %180 = vmatprep.subr.mxu0 0.0
    %181 = vmatpush2.msra.mxu0 0.0
    %182 = vmatprep.subr.mxu0 0.0
    %183 = vmatpush2.msra.mxu0 0.0
    %184 = vmatprep.subr.mxu0 0.0
    %185 = vmatpush2.msra.mxu0 0.0
    %186 = vmatprep.subr.mxu0 0.0
    %187 = vmatpush2.msra.mxu0 0.0
    %188 = vmatprep.subr.mxu0 0.0
    %189 = vmatpush2.msra.mxu0 0.0
    %190 = vmatprep.subr.mxu0 0.0
    %191 = vmatpush2.msra.mxu0 0.0
    %192 = vmatprep.subr.mxu0 0.0
    %193 = vmatpush2.msra.mxu0 0.0
    %194 = vmatprep.subr.mxu0 0.0
    %195 = vmatpush2.msra.mxu0 0.0
    %196 = vmatprep.subr.mxu0 0.0
    %197 = vmatpush2.msra.mxu0 0.0
    %198 = vmatprep.subr.mxu0 0.0
    %199 = vmatpush2.msra.mxu0 0.0
    %200 = vmatprep.subr.mxu0 0.0
    %201 = vmatpush2.msra.mxu0 0.0
    %202 = vmatprep.subr.mxu0 0.0
    %203 = vmatpush2.msra.mxu0 0.0
    %204 = vmatprep.subr.mxu0 0.0
    %205 = vmatpush2.msra.mxu0 0.0
    %206 = vmatprep.subr.mxu0 0.0
    %207 = vmatpush2.msra.mxu0 0.0
    %208 = vmatprep.mubr.f32.mxu0 0.0
    %209 = vmatmul.mubr.f32.gmra.mxu0 %v53
    %v210 = vpop.f32.mrf.mxu0
    %v211 = vadd.f32 0.0, %v210
    %v212 = vpop.f32.mrf.mxu0
    %v213 = vadd.f32 0.0, %v212
    %214 = vmatprep.mubr.f32.mxu0 0.0
    %215 = vmatmul.mubr.f32.gmra.mxu0 %v56
    %v216 = vpop.f32.mrf.mxu0
    %v217 = vadd.f32 0.0, %v216
    %v218 = vpop.f32.mrf.mxu0
    %v219 = vadd.f32 0.0, %v218
    %220 = vmatprep.mubr.f32.mxu0 0.0
    %221 = vmatmul.mubr.f32.gmra.mxu0 %v59
    %v222 = vpop.f32.mrf.mxu0
    %v223 = vadd.f32 0.0, %v222
    %v224 = vpop.f32.mrf.mxu0
    %v225 = vadd.f32 0.0, %v224
    %226 = vdwg.mxu0
    %227 = vmatprep.subr.mxu0 0.0
    %228 = vmatpush1.msra.mxu0 0.0
    %229 = vmatprep.subr.mxu0 0.0
    %230 = vmatpush1.msra.mxu0 0.0
    %231 = vmatprep.subr.mxu0 0.0
    %232 = vmatpush1.msra.mxu0 0.0
    %233 = vmatprep.subr.mxu0 0.0
    %234 = vmatpush1.msra.mxu0 0.0
    %235 = vmatprep.subr.mxu0 0.0
    %236 = vmatpush1.msra.mxu0 0.0
    %237 = vmatprep.subr.mxu0 0.0
    %238 = vmatpush1.msra.mxu0 0.0
    %239 = vmatprep.subr.mxu0 0.0
    %240 = vmatpush1.msra.mxu0 0.0
    %241 = vmatprep.subr.mxu0 0.0
    %242 = vmatpush1.msra.mxu0 0.0
    %243 = vmatprep.subr.mxu0 0.0
    %244 = vmatpush1.msra.mxu0 0.0
    %245 = vmatprep.subr.mxu0 0.0
    %246 = vmatpush1.msra.mxu0 0.0
    %247 = vmatprep.subr.mxu0 0.0
    %248 = vmatpush1.msra.mxu0 0.0
    %249 = vmatprep.subr.mxu0 0.0
    %250 = vmatpush1.msra.mxu0 0.0
    %251 = vmatprep.subr.mxu0 0.0
    %252 = vmatpush1.msra.mxu0 0.0
    %253 = vmatprep.subr.mxu0 0.0
    %254 = vmatpush1.msra.mxu0 0.0
    %255 = vmatprep.subr.mxu0 0.0
    %256 = vmatpush1.msra.mxu0 0.0
    %257 = vmatprep.subr.mxu0 %v45
    %258 = vmatpush1.msra.mxu0 %v44
    %259 = vmatprep.subr.mxu0 0.0
    %260 = vmatpush2.msra.mxu0 0.0
    %261 = vmatprep.subr.mxu0 0.0
    %262 = vmatpush2.msra.mxu0 0.0
    %263 = vmatprep.subr.mxu0 0.0
    %264 = vmatpush2.msra.mxu0 0.0
    %265 = vmatprep.subr.mxu0 0.0
    %266 = vmatpush2.msra.mxu0 0.0
    %267 = vmatprep.subr.mxu0 0.0
    %268 = vmatpush2.msra.mxu0 0.0
    %269 = vmatprep.subr.mxu0 0.0
    %270 = vmatpush2.msra.mxu0 0.0
    %271 = vmatprep.subr.mxu0 0.0
    %272 = vmatpush2.msra.mxu0 0.0
    %273 = vmatprep.subr.mxu0 0.0
    %274 = vmatpush2.msra.mxu0 0.0
    %275 = vmatprep.subr.mxu0 0.0
    %276 = vmatpush2.msra.mxu0 0.0
    %277 = vmatprep.subr.mxu0 0.0
    %278 = vmatpush2.msra.mxu0 0.0
    %279 = vmatprep.subr.mxu0 0.0
    %280 = vmatpush2.msra.mxu0 0.0
    %281 = vmatprep.subr.mxu0 0.0
    %282 = vmatpush2.msra.mxu0 0.0
    %283 = vmatprep.subr.mxu0 0.0
    %284 = vmatpush2.msra.mxu0 0.0
    %285 = vmatprep.subr.mxu0 0.0
    %286 = vmatpush2.msra.mxu0 0.0
    %287 = vmatprep.subr.mxu0 0.0
    %288 = vmatpush2.msra.mxu0 0.0
    %289 = vmatprep.subr.mxu0 0.0
    %290 = vmatpush2.msra.mxu0 0.0
    %291 = vmatprep.mubr.f32.mxu0 0.0
    %292 = vmatmul.mubr.f32.gmra.mxu0 %v53
    %v293 = vpop.f32.mrf.mxu0
    %v294 = vadd.f32 0.0, %v293
    %v295 = vpop.f32.mrf.mxu0
    %v296 = vadd.f32 0.0, %v295
    %297 = vmatprep.mubr.f32.mxu0 0.0
    %298 = vmatmul.mubr.f32.gmra.mxu0 %v56
    %v299 = vpop.f32.mrf.mxu0
    %v300 = vadd.f32 0.0, %v299
    %v301 = vpop.f32.mrf.mxu0
    %v302 = vadd.f32 0.0, %v301
    %303 = vmatprep.mubr.f32.mxu0 0.0
    %304 = vmatmul.mubr.f32.gmra.mxu0 %v59
    %v305 = vpop.f32.mrf.mxu0
    %v306 = vadd.f32 0.0, %v305
    %v307 = vpop.f32.mrf.mxu0
    %v308 = vadd.f32 0.0, %v307
    %309 = vdwg.mxu0
    %310 = vmatprep.subr.mxu0 0.0
    %311 = vmatpush1.msra.mxu0 0.0
    %312 = vmatprep.subr.mxu0 0.0
    %313 = vmatpush1.msra.mxu0 0.0
    %314 = vmatprep.subr.mxu0 0.0
    %315 = vmatpush1.msra.mxu0 0.0
    %316 = vmatprep.subr.mxu0 0.0
    %317 = vmatpush1.msra.mxu0 0.0
    %318 = vmatprep.subr.mxu0 0.0
    %319 = vmatpush1.msra.mxu0 0.0
    %320 = vmatprep.subr.mxu0 0.0
    %321 = vmatpush1.msra.mxu0 0.0
    %322 = vmatprep.subr.mxu0 0.0
    %323 = vmatpush1.msra.mxu0 0.0
    %324 = vmatprep.subr.mxu0 0.0
    %325 = vmatpush1.msra.mxu0 0.0
    %326 = vmatprep.subr.mxu0 0.0
    %327 = vmatpush1.msra.mxu0 0.0
    %328 = vmatprep.subr.mxu0 0.0
    %329 = vmatpush1.msra.mxu0 0.0
    %330 = vmatprep.subr.mxu0 0.0
    %331 = vmatpush1.msra.mxu0 0.0
    %332 = vmatprep.subr.mxu0 0.0
    %333 = vmatpush1.msra.mxu0 0.0
    %334 = vmatprep.subr.mxu0 0.0
    %335 = vmatpush1.msra.mxu0 0.0
    %336 = vmatprep.subr.mxu0 0.0
    %337 = vmatpush1.msra.mxu0 0.0
    %338 = vmatprep.subr.mxu0 0.0
    %339 = vmatpush1.msra.mxu0 0.0
    %340 = vmatprep.subr.mxu0 %v47
    %341 = vmatpush1.msra.mxu0 %v46
    %342 = vmatprep.subr.mxu0 0.0
    %343 = vmatpush2.msra.mxu0 0.0
    %344 = vmatprep.subr.mxu0 0.0
    %345 = vmatpush2.msra.mxu0 0.0
    %346 = vmatprep.subr.mxu0 0.0
    %347 = vmatpush2.msra.mxu0 0.0
    %348 = vmatprep.subr.mxu0 0.0
    %349 = vmatpush2.msra.mxu0 0.0
    %350 = vmatprep.subr.mxu0 0.0
    %351 = vmatpush2.msra.mxu0 0.0
    %352 = vmatprep.subr.mxu0 0.0
    %353 = vmatpush2.msra.mxu0 0.0
    %354 = vmatprep.subr.mxu0 0.0
    %355 = vmatpush2.msra.mxu0 0.0
    %356 = vmatprep.subr.mxu0 0.0
    %357 = vmatpush2.msra.mxu0 0.0
    %358 = vmatprep.subr.mxu0 0.0
    %359 = vmatpush2.msra.mxu0 0.0
    %360 = vmatprep.subr.mxu0 0.0
    %361 = vmatpush2.msra.mxu0 0.0
    %362 = vmatprep.subr.mxu0 0.0
    %363 = vmatpush2.msra.mxu0 0.0
    %364 = vmatprep.subr.mxu0 0.0
    %365 = vmatpush2.msra.mxu0 0.0
    %366 = vmatprep.subr.mxu0 0.0
    %367 = vmatpush2.msra.mxu0 0.0
    %368 = vmatprep.subr.mxu0 0.0
    %369 = vmatpush2.msra.mxu0 0.0
    %370 = vmatprep.subr.mxu0 0.0
    %371 = vmatpush2.msra.mxu0 0.0
    %372 = vmatprep.subr.mxu0 0.0
    %373 = vmatpush2.msra.mxu0 0.0
    %374 = vmatprep.mubr.f32.mxu0 0.0
    %375 = vmatmul.mubr.f32.gmra.mxu0 %v53
    %v376 = vpop.f32.mrf.mxu0
    %v377 = vadd.f32 0.0, %v376
    %v378 = vpop.f32.mrf.mxu0
    %v379 = vadd.f32 0.0, %v378
    %380 = vmatprep.mubr.f32.mxu0 0.0
    %381 = vmatmul.mubr.f32.gmra.mxu0 %v56
    %v382 = vpop.f32.mrf.mxu0
    %v383 = vadd.f32 0.0, %v382
    %v384 = vpop.f32.mrf.mxu0
    %v385 = vadd.f32 0.0, %v384
    %386 = vmatprep.mubr.f32.mxu0 0.0
    %387 = vmatmul.mubr.f32.gmra.mxu0 %v59
    %v388 = vpop.f32.mrf.mxu0
    %v389 = vadd.f32 0.0, %v388
    %v390 = vpop.f32.mrf.mxu0
    %v391 = vadd.f32 0.0, %v390
    %392 = vdwg.mxu0
    %v393 = vld [vmem:[#allocation2] sm:$0xf]
    %v394 = vld [vmem:[#allocation2 + $0x4] sm:$0xf]
    %v395 = vld [vmem:[#allocation2 + $0x8] sm:$0xf]
    %v396 = vld [vmem:[#allocation2 + $0xc] sm:$0xf]
    %v397 = vld [vmem:[#allocation2 + $0x10] sm:$0xf]
    %v398 = vld [vmem:[#allocation2 + $0x14] sm:$0xf]
    %v399 = vld [vmem:[#allocation2 + $0x18] sm:$0xf]
    %v400 = vld [vmem:[#allocation2 + $0x1c] sm:$0xf]
    %v401 = vld [vmem:[#allocation2 + $0x20] sm:$0xf]
    %v402 = vld [vmem:[#allocation2 + $0x24] sm:$0xf]
    %v403 = vld [vmem:[#allocation2 + $0x28] sm:$0xf]
    %v404 = vld [vmem:[#allocation2 + $0x2c] sm:$0xf]
    %v405 = vld [vmem:[#allocation2 + $0x30] sm:$0xf]
    %v406 = vld [vmem:[#allocation2 + $0x34] sm:$0xf]
    %v407 = vld [vmem:[#allocation2 + $0x38] sm:$0xf]
    %v408 = vld [vmem:[#allocation2 + $0x3c] sm:$0xf]
    %v409 = vld [vmem:[#allocation2 + $0x40] sm:$0xf]
    %v410 = vld [vmem:[#allocation2 + $0x44] sm:$0xf]
    %v411 = vld [vmem:[#allocation2 + $0x48] sm:$0xf]
    %v412 = vld [vmem:[#allocation2 + $0x4c] sm:$0xf]
    %v413 = vld [vmem:[#allocation2 + $0x50] sm:$0xf]
    %v414 = vld [vmem:[#allocation2 + $0x54] sm:$0xf]
    %v415 = vld [vmem:[#allocation2 + $0x58] sm:$0xf]
    %v416 = vld [vmem:[#allocation2 + $0x5c] sm:$0xf]
    %v417 = vld [vmem:[#allocation2 + $0x60] sm:$0xf]
    %v418 = vld [vmem:[#allocation2 + $0x64] sm:$0xf]
    %v419 = vld [vmem:[#allocation2 + $0x68] sm:$0xf]
    %v420 = vld [vmem:[#allocation2 + $0x6c] sm:$0xf]
    %v421 = vld [vmem:[#allocation2 + $0x70] sm:$0xf]
    %v422 = vld [vmem:[#allocation2 + $0x74] sm:$0xf]
    %v423 = vld [vmem:[#allocation2 + $0x78] sm:$0xf]
    %v424 = vld [vmem:[#allocation2 + $0x7c] sm:$0xf]
    %v425 = vld [vmem:[#allocation2 + $0x80] sm:$0xf]
    %v426 = vld [vmem:[#allocation2 + $0x84] sm:$0xf]
    %v427 = vld [vmem:[#allocation2 + $0x88] sm:$0xf]
    %v428 = vld [vmem:[#allocation2 + $0x8c] sm:$0xf]
    %v429 = vld [vmem:[#allocation2 + $0x90] sm:$0xf]
    %v430 = vld [vmem:[#allocation2 + $0x94] sm:$0xf]
    %v431 = vld [vmem:[#allocation2 + $0x98] sm:$0xf]
    %v432 = vld [vmem:[#allocation2 + $0x9c] sm:$0xf]
    %v433 = vld [vmem:[#allocation2 + $0xa0] sm:$0xf]
    %v434 = vld [vmem:[#allocation2 + $0xa4] sm:$0xf]
    %v435 = vld [vmem:[#allocation2 + $0xa8] sm:$0xf]
    %v436 = vld [vmem:[#allocation2 + $0xac] sm:$0xf]
    %v437 = vld [vmem:[#allocation2 + $0xb0] sm:$0xf]
    %v438 = vld [vmem:[#allocation2 + $0xb4] sm:$0xf]
    %v439 = vld [vmem:[#allocation2 + $0xb8] sm:$0xf]
    %v440 = vld [vmem:[#allocation2 + $0xbc] sm:$0xf]
    %v441 = vld [vmem:[#allocation2 + $0xc0] sm:$0xf]
    %v442 = vld [vmem:[#allocation2 + $0xc4] sm:$0xf]
    %v443 = vld [vmem:[#allocation2 + $0xc8] sm:$0xf]
    %v444 = vld [vmem:[#allocation2 + $0xcc] sm:$0xf]
    %v445 = vld [vmem:[#allocation2 + $0xd0] sm:$0xf]
    %v446 = vld [vmem:[#allocation2 + $0xd4] sm:$0xf]
    %v447 = vld [vmem:[#allocation2 + $0xd8] sm:$0xf]
    %v448 = vld [vmem:[#allocation2 + $0xdc] sm:$0xf]
    %v449 = vld [vmem:[#allocation2 + $0xe0] sm:$0xf]
    %v450 = vld [vmem:[#allocation2 + $0xe4] sm:$0xf]
    %v451 = vld [vmem:[#allocation2 + $0xe8] sm:$0xf]
    %v452 = vld [vmem:[#allocation2 + $0xec] sm:$0xf]
    %v453 = vld [vmem:[#allocation2 + $0xf0] sm:$0xf]
    %v454 = vld [vmem:[#allocation2 + $0xf4] sm:$0xf]
    %v455 = vld [vmem:[#allocation2 + $0xf8] sm:$0xf]
    %v456 = vld [vmem:[#allocation2 + $0xfc] sm:$0xf]
    %v457 = vld [vmem:[#allocation2 + $0x100] sm:$0xf]
    %v458 = vld [vmem:[#allocation2 + $0x104] sm:$0xf]
    %v459 = vld [vmem:[#allocation2 + $0x108] sm:$0xf]
    %v460 = vld [vmem:[#allocation2 + $0x10c] sm:$0xf]
    %v461 = vld [vmem:[#allocation2 + $0x110] sm:$0xf]
    %v462 = vld [vmem:[#allocation2 + $0x114] sm:$0xf]
    %v463 = vld [vmem:[#allocation2 + $0x118] sm:$0xf]
    %v464 = vld [vmem:[#allocation2 + $0x11c] sm:$0xf]
    %v465 = vld [vmem:[#allocation2 + $0x120] sm:$0xf]
    %v466 = vld [vmem:[#allocation2 + $0x124] sm:$0xf]
    %v467 = vld [vmem:[#allocation2 + $0x128] sm:$0xf]
    %v468 = vld [vmem:[#allocation2 + $0x12c] sm:$0xf]
    %v469 = vld [vmem:[#allocation2 + $0x130] sm:$0xf]
    %v470 = vld [vmem:[#allocation2 + $0x134] sm:$0xf]
    %v471 = vld [vmem:[#allocation2 + $0x138] sm:$0xf]
    %v472 = vld [vmem:[#allocation2 + $0x13c] sm:$0xf]
    %v473 = vld [vmem:[#allocation2 + $0x140] sm:$0xf]
    %v474 = vld [vmem:[#allocation2 + $0x144] sm:$0xf]
    %v475 = vld [vmem:[#allocation2 + $0x148] sm:$0xf]
    %v476 = vld [vmem:[#allocation2 + $0x14c] sm:$0xf]
    %v477 = vld [vmem:[#allocation2 + $0x150] sm:$0xf]
    %v478 = vld [vmem:[#allocation2 + $0x154] sm:$0xf]
    %v479 = vld [vmem:[#allocation2 + $0x158] sm:$0xf]
    %v480 = vld [vmem:[#allocation2 + $0x15c] sm:$0xf]
    %v481 = vld [vmem:[#allocation2 + $0x160] sm:$0xf]
    %v482 = vld [vmem:[#allocation2 + $0x164] sm:$0xf]
    %v483 = vld [vmem:[#allocation2 + $0x168] sm:$0xf]
    %v484 = vld [vmem:[#allocation2 + $0x16c] sm:$0xf]
    %v485 = vld [vmem:[#allocation2 + $0x170] sm:$0xf]
    %v486 = vld [vmem:[#allocation2 + $0x174] sm:$0xf]
    %v487 = vld [vmem:[#allocation2 + $0x178] sm:$0xf]
    %v488 = vld [vmem:[#allocation2 + $0x17c] sm:$0xf]
    %v489 = vld [vmem:[#allocation2 + $0x180] sm:$0xf]
    %v490 = vld [vmem:[#allocation2 + $0x184] sm:$0xf]
    %v491 = vld [vmem:[#allocation2 + $0x188] sm:$0xf]
    %v492 = vld [vmem:[#allocation2 + $0x18c] sm:$0xf]
    %v493 = vld [vmem:[#allocation2 + $0x190] sm:$0xf]
    %v494 = vld [vmem:[#allocation2 + $0x194] sm:$0xf]
    %v495 = vld [vmem:[#allocation2 + $0x198] sm:$0xf]
    %v496 = vld [vmem:[#allocation2 + $0x19c] sm:$0xf]
    %v497 = vld [vmem:[#allocation2 + $0x1a0] sm:$0xf]
    %v498 = vld [vmem:[#allocation2 + $0x1a4] sm:$0xf]
    %v499 = vld [vmem:[#allocation2 + $0x1a8] sm:$0xf]
    %v500 = vld [vmem:[#allocation2 + $0x1ac] sm:$0xf]
    %v501 = vld [vmem:[#allocation2 + $0x1b0] sm:$0xf]
    %v502 = vld [vmem:[#allocation2 + $0x1b4] sm:$0xf]
    %v503 = vld [vmem:[#allocation2 + $0x1b8] sm:$0xf]
    %v504 = vld [vmem:[#allocation2 + $0x1bc] sm:$0xf]
    %v505 = vld [vmem:[#allocation2 + $0x1c0] sm:$0xf]
    %v506 = vld [vmem:[#allocation2 + $0x1c4] sm:$0xf]
    %v507 = vld [vmem:[#allocation2 + $0x1c8] sm:$0xf]
    %v508 = vld [vmem:[#allocation2 + $0x1cc] sm:$0xf]
    %v509 = vld [vmem:[#allocation2 + $0x1d0] sm:$0xf]
    %v510 = vld [vmem:[#allocation2 + $0x1d4] sm:$0xf]
    %v511 = vld [vmem:[#allocation2 + $0x1d8] sm:$0xf]
    %v512 = vld [vmem:[#allocation2 + $0x1dc] sm:$0xf]
    %v513 = vld [vmem:[#allocation2 + $0x1e0] sm:$0xf]
    %v514 = vld [vmem:[#allocation2 + $0x1e4] sm:$0xf]
    %v515 = vld [vmem:[#allocation2 + $0x1e8] sm:$0xf]
    %v516 = vld [vmem:[#allocation2 + $0x1ec] sm:$0xf]
    %v517 = vld [vmem:[#allocation2 + $0x1f0] sm:$0xf]
    %v518 = vld [vmem:[#allocation2 + $0x1f4] sm:$0xf]
    %v519 = vld [vmem:[#allocation2 + $0x1f8] sm:$0xf]
    %v520 = vld [vmem:[#allocation2 + $0x1fc] sm:$0xf]
    %v521 = vunpack.c.l.bf16 %v393
    %v522 = vunpack.c.l.bf16 %v394
    %v523 = vunpack.c.l.bf16 %v395
    %v524 = vunpack.c.l.bf16 %v396
    %v525 = vunpack.c.l.bf16 %v397
    %v526 = vunpack.c.l.bf16 %v398
    %v527 = vunpack.c.l.bf16 %v399
    %v528 = vunpack.c.l.bf16 %v400
    %v529 = vunpack.c.l.bf16 %v401
    %v530 = vunpack.c.l.bf16 %v402
    %v531 = vunpack.c.l.bf16 %v403
    %v532 = vunpack.c.l.bf16 %v404
    %v533 = vunpack.c.l.bf16 %v405
    %v534 = vunpack.c.l.bf16 %v406
    %v535 = vunpack.c.l.bf16 %v407
    %v536 = vunpack.c.l.bf16 %v408
    %v537 = vunpack.c.l.bf16 %v409
    %v538 = vunpack.c.l.bf16 %v410
    %v539 = vunpack.c.l.bf16 %v411
    %v540 = vunpack.c.l.bf16 %v412
    %v541 = vunpack.c.l.bf16 %v413
    %v542 = vunpack.c.l.bf16 %v414
    %v543 = vunpack.c.l.bf16 %v415
    %v544 = vunpack.c.l.bf16 %v416
    %v545 = vunpack.c.l.bf16 %v417
    %v546 = vunpack.c.l.bf16 %v418
    %v547 = vunpack.c.l.bf16 %v419
    %v548 = vunpack.c.l.bf16 %v420
    %v549 = vunpack.c.l.bf16 %v421
    %v550 = vunpack.c.l.bf16 %v422
    %v551 = vunpack.c.l.bf16 %v423
    %v552 = vunpack.c.l.bf16 %v424
    %v553 = vunpack.c.l.bf16 %v425
    %v554 = vunpack.c.l.bf16 %v426
    %v555 = vunpack.c.l.bf16 %v427
    %v556 = vunpack.c.l.bf16 %v428
    %v557 = vunpack.c.l.bf16 %v429
    %v558 = vunpack.c.l.bf16 %v430
    %v559 = vunpack.c.l.bf16 %v431
    %v560 = vunpack.c.l.bf16 %v432
    %v561 = vunpack.c.l.bf16 %v433
    %v562 = vunpack.c.l.bf16 %v434
    %v563 = vunpack.c.l.bf16 %v435
    %v564 = vunpack.c.l.bf16 %v436
    %v565 = vunpack.c.l.bf16 %v437
    %v566 = vunpack.c.l.bf16 %v438
    %v567 = vunpack.c.l.bf16 %v439
    %v568 = vunpack.c.l.bf16 %v440
    %v569 = vunpack.c.l.bf16 %v441
    %v570 = vunpack.c.l.bf16 %v442
    %v571 = vunpack.c.l.bf16 %v443
    %v572 = vunpack.c.l.bf16 %v444
    %v573 = vunpack.c.l.bf16 %v445
    %v574 = vunpack.c.l.bf16 %v446
    %v575 = vunpack.c.l.bf16 %v447
    %v576 = vunpack.c.l.bf16 %v448
    %v577 = vunpack.c.l.bf16 %v449
    %v578 = vunpack.c.l.bf16 %v450
    %v579 = vunpack.c.l.bf16 %v451
    %v580 = vunpack.c.l.bf16 %v452
    %v581 = vunpack.c.l.bf16 %v453
    %v582 = vunpack.c.l.bf16 %v454
    %v583 = vunpack.c.l.bf16 %v455
    %v584 = vunpack.c.l.bf16 %v456
    %v585 = vunpack.c.l.bf16 %v457
    %v586 = vunpack.c.l.bf16 %v458
    %v587 = vunpack.c.l.bf16 %v459
    %v588 = vunpack.c.l.bf16 %v460
    %v589 = vunpack.c.l.bf16 %v461
    %v590 = vunpack.c.l.bf16 %v462
    %v591 = vunpack.c.l.bf16 %v463
    %v592 = vunpack.c.l.bf16 %v464
    %v593 = vunpack.c.l.bf16 %v465
    %v594 = vunpack.c.l.bf16 %v466
    %v595 = vunpack.c.l.bf16 %v467
    %v596 = vunpack.c.l.bf16 %v468
    %v597 = vunpack.c.l.bf16 %v469
    %v598 = vunpack.c.l.bf16 %v470
    %v599 = vunpack.c.l.bf16 %v471
    %v600 = vunpack.c.l.bf16 %v472
    %v601 = vunpack.c.l.bf16 %v473
    %v602 = vunpack.c.l.bf16 %v474
    %v603 = vunpack.c.l.bf16 %v475
    %v604 = vunpack.c.l.bf16 %v476
    %v605 = vunpack.c.l.bf16 %v477
    %v606 = vunpack.c.l.bf16 %v478
    %v607 = vunpack.c.l.bf16 %v479
    %v608 = vunpack.c.l.bf16 %v480
    %v609 = vunpack.c.l.bf16 %v481
    %v610 = vunpack.c.l.bf16 %v482
    %v611 = vunpack.c.l.bf16 %v483
    %v612 = vunpack.c.l.bf16 %v484
    %v613 = vunpack.c.l.bf16 %v485
    %v614 = vunpack.c.l.bf16 %v486
    %v615 = vunpack.c.l.bf16 %v487
    %v616 = vunpack.c.l.bf16 %v488
    %v617 = vunpack.c.l.bf16 %v489
    %v618 = vunpack.c.l.bf16 %v490
    %v619 = vunpack.c.l.bf16 %v491
    %v620 = vunpack.c.l.bf16 %v492
    %v621 = vunpack.c.l.bf16 %v493
    %v622 = vunpack.c.l.bf16 %v494
    %v623 = vunpack.c.l.bf16 %v495
    %v624 = vunpack.c.l.bf16 %v496
    %v625 = vunpack.c.l.bf16 %v497
    %v626 = vunpack.c.l.bf16 %v498
    %v627 = vunpack.c.l.bf16 %v499
    %v628 = vunpack.c.l.bf16 %v500
    %v629 = vunpack.c.l.bf16 %v501
    %v630 = vunpack.c.l.bf16 %v502
    %v631 = vunpack.c.l.bf16 %v503
    %v632 = vunpack.c.l.bf16 %v504
    %v633 = vunpack.c.l.bf16 %v505
    %v634 = vunpack.c.l.bf16 %v506
    %v635 = vunpack.c.l.bf16 %v507
    %v636 = vunpack.c.l.bf16 %v508
    %v637 = vunpack.c.l.bf16 %v509
    %v638 = vunpack.c.l.bf16 %v510
    %v639 = vunpack.c.l.bf16 %v511
    %v640 = vunpack.c.l.bf16 %v512
    %v641 = vunpack.c.l.bf16 %v513
    %v642 = vunpack.c.l.bf16 %v514
    %v643 = vunpack.c.l.bf16 %v515
    %v644 = vunpack.c.l.bf16 %v516
    %v645 = vunpack.c.l.bf16 %v517
    %v646 = vunpack.c.l.bf16 %v518
    %v647 = vunpack.c.l.bf16 %v519
    %v648 = vunpack.c.l.bf16 %v520
    %v649 = vld [vmem:[%s4] sm:$0xff]
    %v650 = vld [vmem:[%s4 + $0x8] sm:$0xff]
    %v651 = vld [vmem:[%s4 + $0x10] sm:$0xff]
    %v652 = vld [vmem:[%s4 + $0x18] sm:$0xff]
    %v653 = vld [vmem:[%s4 + $0x20] sm:$0xff]
    %v654 = vld [vmem:[%s4 + $0x28] sm:$0xff]
    %v655 = vld [vmem:[%s4 + $0x30] sm:$0xff]
    %v656 = vld [vmem:[%s4 + $0x38] sm:$0xff]
    %v657 = vld [vmem:[%s4 + $0x40] sm:$0xff]
    %v658 = vld [vmem:[%s4 + $0x48] sm:$0xff]
    %v659 = vld [vmem:[%s4 + $0x50] sm:$0xff]
    %v660 = vld [vmem:[%s4 + $0x58] sm:$0xff]
    %v661 = vld [vmem:[%s4 + $0x60] sm:$0xff]
    %v662 = vld [vmem:[%s4 + $0x68] sm:$0xff]
    %v663 = vld [vmem:[%s4 + $0x70] sm:$0xff]
    %v664 = vld [vmem:[%s4 + $0x78] sm:$0xff]
    %v665 = vld [vmem:[%s4 + $0x80] sm:$0xff]
    %v666 = vld [vmem:[%s4 + $0x88] sm:$0xff]
    %v667 = vld [vmem:[%s4 + $0x90] sm:$0xff]
    %v668 = vld [vmem:[%s4 + $0x98] sm:$0xff]
    %v669 = vld [vmem:[%s4 + $0xa0] sm:$0xff]
    %v670 = vld [vmem:[%s4 + $0xa8] sm:$0xff]
    %v671 = vld [vmem:[%s4 + $0xb0] sm:$0xff]
    %v672 = vld [vmem:[%s4 + $0xb8] sm:$0xff]
    %v673 = vld [vmem:[%s4 + $0xc0] sm:$0xff]
    %v674 = vld [vmem:[%s4 + $0xc8] sm:$0xff]
    %v675 = vld [vmem:[%s4 + $0xd0] sm:$0xff]
    %v676 = vld [vmem:[%s4 + $0xd8] sm:$0xff]
    %v677 = vld [vmem:[%s4 + $0xe0] sm:$0xff]
    %v678 = vld [vmem:[%s4 + $0xe8] sm:$0xff]
    %v679 = vld [vmem:[%s4 + $0xf0] sm:$0xff]
    %v680 = vld [vmem:[%s4 + $0xf8] sm:$0xff]
    %v681 = vld [vmem:[%s4 + $0x100] sm:$0xff]
    %v682 = vld [vmem:[%s4 + $0x108] sm:$0xff]
    %v683 = vld [vmem:[%s4 + $0x110] sm:$0xff]
    %v684 = vld [vmem:[%s4 + $0x118] sm:$0xff]
    %v685 = vld [vmem:[%s4 + $0x120] sm:$0xff]
    %v686 = vld [vmem:[%s4 + $0x128] sm:$0xff]
    %v687 = vld [vmem:[%s4 + $0x130] sm:$0xff]
    %v688 = vld [vmem:[%s4 + $0x138] sm:$0xff]
    %v689 = vld [vmem:[%s4 + $0x140] sm:$0xff]
    %v690 = vld [vmem:[%s4 + $0x148] sm:$0xff]
    %v691 = vld [vmem:[%s4 + $0x150] sm:$0xff]
    %v692 = vld [vmem:[%s4 + $0x158] sm:$0xff]
    %v693 = vld [vmem:[%s4 + $0x160] sm:$0xff]
    %v694 = vld [vmem:[%s4 + $0x168] sm:$0xff]
    %v695 = vld [vmem:[%s4 + $0x170] sm:$0xff]
    %v696 = vld [vmem:[%s4 + $0x178] sm:$0xff]
    %v697 = vld [vmem:[%s4 + $0x180] sm:$0xff]
    %v698 = vld [vmem:[%s4 + $0x188] sm:$0xff]
    %v699 = vld [vmem:[%s4 + $0x190] sm:$0xff]
    %v700 = vld [vmem:[%s4 + $0x198] sm:$0xff]
    %v701 = vld [vmem:[%s4 + $0x1a0] sm:$0xff]
    %v702 = vld [vmem:[%s4 + $0x1a8] sm:$0xff]
    %v703 = vld [vmem:[%s4 + $0x1b0] sm:$0xff]
    %v704 = vld [vmem:[%s4 + $0x1b8] sm:$0xff]
    %v705 = vld [vmem:[%s4 + $0x1c0] sm:$0xff]
    %v706 = vld [vmem:[%s4 + $0x1c8] sm:$0xff]
    %v707 = vld [vmem:[%s4 + $0x1d0] sm:$0xff]
    %v708 = vld [vmem:[%s4 + $0x1d8] sm:$0xff]
    %v709 = vld [vmem:[%s4 + $0x1e0] sm:$0xff]
    %v710 = vld [vmem:[%s4 + $0x1e8] sm:$0xff]
    %v711 = vld [vmem:[%s4 + $0x1f0] sm:$0xff]
    %v712 = vld [vmem:[%s4 + $0x1f8] sm:$0xff]
    %v713 = vunpack.c.l.bf16 %v649
    %v714 = vunpack.c.h.bf16 %v649
    %v715 = vunpack.c.l.bf16 %v650
    %v716 = vunpack.c.h.bf16 %v650
    %v717 = vunpack.c.l.bf16 %v651
    %v718 = vunpack.c.h.bf16 %v651
    %v719 = vunpack.c.l.bf16 %v652
    %v720 = vunpack.c.h.bf16 %v652
    %v721 = vunpack.c.l.bf16 %v653
    %v722 = vunpack.c.h.bf16 %v653
    %v723 = vunpack.c.l.bf16 %v654
    %v724 = vunpack.c.h.bf16 %v654
    %v725 = vunpack.c.l.bf16 %v655
    %v726 = vunpack.c.h.bf16 %v655
    %v727 = vunpack.c.l.bf16 %v656
    %v728 = vunpack.c.h.bf16 %v656
    %v729 = vunpack.c.l.bf16 %v657
    %v730 = vunpack.c.h.bf16 %v657
    %v731 = vunpack.c.l.bf16 %v658
    %v732 = vunpack.c.h.bf16 %v658
    %v733 = vunpack.c.l.bf16 %v659
    %v734 = vunpack.c.h.bf16 %v659
    %v735 = vunpack.c.l.bf16 %v660
    %v736 = vunpack.c.h.bf16 %v660
    %v737 = vunpack.c.l.bf16 %v661
    %v738 = vunpack.c.h.bf16 %v661
    %v739 = vunpack.c.l.bf16 %v662
    %v740 = vunpack.c.h.bf16 %v662
    %v741 = vunpack.c.l.bf16 %v663
    %v742 = vunpack.c.h.bf16 %v663
    %v743 = vunpack.c.l.bf16 %v664
    %v744 = vunpack.c.h.bf16 %v664
    %v745 = vunpack.c.l.bf16 %v665
    %v746 = vunpack.c.h.bf16 %v665
    %v747 = vunpack.c.l.bf16 %v666
    %v748 = vunpack.c.h.bf16 %v666
    %v749 = vunpack.c.l.bf16 %v667
    %v750 = vunpack.c.h.bf16 %v667
    %v751 = vunpack.c.l.bf16 %v668
    %v752 = vunpack.c.h.bf16 %v668
    %v753 = vunpack.c.l.bf16 %v669
    %v754 = vunpack.c.h.bf16 %v669
    %v755 = vunpack.c.l.bf16 %v670
    %v756 = vunpack.c.h.bf16 %v670
    %v757 = vunpack.c.l.bf16 %v671
    %v758 = vunpack.c.h.bf16 %v671
    %v759 = vunpack.c.l.bf16 %v672
    %v760 = vunpack.c.h.bf16 %v672
    %v761 = vunpack.c.l.bf16 %v673
    %v762 = vunpack.c.h.bf16 %v673
    %v763 = vunpack.c.l.bf16 %v674
    %v764 = vunpack.c.h.bf16 %v674
    %v765 = vunpack.c.l.bf16 %v675
    %v766 = vunpack.c.h.bf16 %v675
    %v767 = vunpack.c.l.bf16 %v676
    %v768 = vunpack.c.h.bf16 %v676
    %v769 = vunpack.c.l.bf16 %v677
    %v770 = vunpack.c.h.bf16 %v677
    %v771 = vunpack.c.l.bf16 %v678
    %v772 = vunpack.c.h.bf16 %v678
    %v773 = vunpack.c.l.bf16 %v679
    %v774 = vunpack.c.h.bf16 %v679
    %v775 = vunpack.c.l.bf16 %v680
    %v776 = vunpack.c.h.bf16 %v680
    %v777 = vunpack.c.l.bf16 %v681
    %v778 = vunpack.c.h.bf16 %v681
    %v779 = vunpack.c.l.bf16 %v682
    %v780 = vunpack.c.h.bf16 %v682
    %v781 = vunpack.c.l.bf16 %v683
    %v782 = vunpack.c.h.bf16 %v683
    %v783 = vunpack.c.l.bf16 %v684
    %v784 = vunpack.c.h.bf16 %v684
    %v785 = vunpack.c.l.bf16 %v685
    %v786 = vunpack.c.h.bf16 %v685
    %v787 = vunpack.c.l.bf16 %v686
    %v788 = vunpack.c.h.bf16 %v686
    %v789 = vunpack.c.l.bf16 %v687
    %v790 = vunpack.c.h.bf16 %v687
    %v791 = vunpack.c.l.bf16 %v688
    %v792 = vunpack.c.h.bf16 %v688
    %v793 = vunpack.c.l.bf16 %v689
    %v794 = vunpack.c.h.bf16 %v689
    %v795 = vunpack.c.l.bf16 %v690
    %v796 = vunpack.c.h.bf16 %v690
    %v797 = vunpack.c.l.bf16 %v691
    %v798 = vunpack.c.h.bf16 %v691
    %v799 = vunpack.c.l.bf16 %v692
    %v800 = vunpack.c.h.bf16 %v692
    %v801 = vunpack.c.l.bf16 %v693
    %v802 = vunpack.c.h.bf16 %v693
    %v803 = vunpack.c.l.bf16 %v694
    %v804 = vunpack.c.h.bf16 %v694
    %v805 = vunpack.c.l.bf16 %v695
    %v806 = vunpack.c.h.bf16 %v695
    %v807 = vunpack.c.l.bf16 %v696
    %v808 = vunpack.c.h.bf16 %v696
    %v809 = vunpack.c.l.bf16 %v697
    %v810 = vunpack.c.h.bf16 %v697
    %v811 = vunpack.c.l.bf16 %v698
    %v812 = vunpack.c.h.bf16 %v698
    %v813 = vunpack.c.l.bf16 %v699
    %v814 = vunpack.c.h.bf16 %v699
    %v815 = vunpack.c.l.bf16 %v700
    %v816 = vunpack.c.h.bf16 %v700
    %v817 = vunpack.c.l.bf16 %v701
    %v818 = vunpack.c.h.bf16 %v701
    %v819 = vunpack.c.l.bf16 %v702
    %v820 = vunpack.c.h.bf16 %v702
    %v821 = vunpack.c.l.bf16 %v703
    %v822 = vunpack.c.h.bf16 %v703
    %v823 = vunpack.c.l.bf16 %v704
    %v824 = vunpack.c.h.bf16 %v704
    %v825 = vunpack.c.l.bf16 %v705
    %v826 = vunpack.c.h.bf16 %v705
    %v827 = vunpack.c.l.bf16 %v706
    %v828 = vunpack.c.h.bf16 %v706
    %v829 = vunpack.c.l.bf16 %v707
    %v830 = vunpack.c.h.bf16 %v707
    %v831 = vunpack.c.l.bf16 %v708
    %v832 = vunpack.c.h.bf16 %v708
    %v833 = vunpack.c.l.bf16 %v709
    %v834 = vunpack.c.h.bf16 %v709
    %v835 = vunpack.c.l.bf16 %v710
    %v836 = vunpack.c.h.bf16 %v710
    %v837 = vunpack.c.l.bf16 %v711
    %v838 = vunpack.c.h.bf16 %v711
    %v839 = vunpack.c.l.bf16 %v712
    %v840 = vunpack.c.h.bf16 %v712
    %841 = vmatprep.subr.mxu0 0.0
    %842 = vmatpush1.msra.mxu0 %v536
    %843 = vmatprep.subr.mxu0 0.0
    %844 = vmatpush1.msra.mxu0 %v535
    %845 = vmatprep.subr.mxu0 0.0
    %846 = vmatpush1.msra.mxu0 %v534
    %847 = vmatprep.subr.mxu0 0.0
    %848 = vmatpush1.msra.mxu0 %v533
    %849 = vmatprep.subr.mxu0 0.0
    %850 = vmatpush1.msra.mxu0 %v532
    %851 = vmatprep.subr.mxu0 0.0
    %852 = vmatpush1.msra.mxu0 %v531
    %853 = vmatprep.subr.mxu0 0.0
    %854 = vmatpush1.msra.mxu0 %v530
    %855 = vmatprep.subr.mxu0 0.0
    %856 = vmatpush1.msra.mxu0 %v529
    %857 = vmatprep.subr.mxu0 0.0
    %858 = vmatpush1.msra.mxu0 %v528
    %859 = vmatprep.subr.mxu0 0.0
    %860 = vmatpush1.msra.mxu0 %v527
    %861 = vmatprep.subr.mxu0 0.0
    %862 = vmatpush1.msra.mxu0 %v526
    %863 = vmatprep.subr.mxu0 0.0
    %864 = vmatpush1.msra.mxu0 %v525
    %865 = vmatprep.subr.mxu0 0.0
    %866 = vmatpush1.msra.mxu0 %v524
    %867 = vmatprep.subr.mxu0 0.0
    %868 = vmatpush1.msra.mxu0 %v523
    %869 = vmatprep.subr.mxu0 0.0
    %870 = vmatpush1.msra.mxu0 %v522
    %871 = vmatprep.subr.mxu0 0.0
    %872 = vmatpush1.msra.mxu0 %v521
    %873 = vmatprep.subr.mxu0 0.0
    %874 = vmatpush2.msra.mxu0 %v552
    %875 = vmatprep.subr.mxu0 0.0
    %876 = vmatpush2.msra.mxu0 %v551
    %877 = vmatprep.subr.mxu0 0.0
    %878 = vmatpush2.msra.mxu0 %v550
    %879 = vmatprep.subr.mxu0 0.0
    %880 = vmatpush2.msra.mxu0 %v549
    %881 = vmatprep.subr.mxu0 0.0
    %882 = vmatpush2.msra.mxu0 %v548
    %883 = vmatprep.subr.mxu0 0.0
    %884 = vmatpush2.msra.mxu0 %v547
    %885 = vmatprep.subr.mxu0 0.0
    %886 = vmatpush2.msra.mxu0 %v546
    %887 = vmatprep.subr.mxu0 0.0
    %888 = vmatpush2.msra.mxu0 %v545
    %889 = vmatprep.subr.mxu0 0.0
    %890 = vmatpush2.msra.mxu0 %v544
    %891 = vmatprep.subr.mxu0 0.0
    %892 = vmatpush2.msra.mxu0 %v543
    %893 = vmatprep.subr.mxu0 0.0
    %894 = vmatpush2.msra.mxu0 %v542
    %895 = vmatprep.subr.mxu0 0.0
    %896 = vmatpush2.msra.mxu0 %v541
    %897 = vmatprep.subr.mxu0 0.0
    %898 = vmatpush2.msra.mxu0 %v540
    %899 = vmatprep.subr.mxu0 0.0
    %900 = vmatpush2.msra.mxu0 %v539
    %901 = vmatprep.subr.mxu0 0.0
    %902 = vmatpush2.msra.mxu0 %v538
    %903 = vmatprep.subr.mxu0 0.0
    %904 = vmatpush2.msra.mxu0 %v537
    %905 = vmatprep.mubr.f32.mxu0 %v142
    %906 = vmatmul.mubr.f32.gmra.mxu0 %v140
    %v907 = vpop.f32.mrf.mxu0
    %v908 = vadd.f32 0.0, %v907
    %v909 = vpop.f32.mrf.mxu0
    %910 = vdwg.mxu0
    %911 = vmatprep.subr.mxu0 0.0
    %912 = vmatpush1.msra.mxu0 %v568
    %913 = vmatprep.subr.mxu0 0.0
    %914 = vmatpush1.msra.mxu0 %v567
    %915 = vmatprep.subr.mxu0 0.0
    %916 = vmatpush1.msra.mxu0 %v566
    %917 = vmatprep.subr.mxu0 0.0
    %918 = vmatpush1.msra.mxu0 %v565
    %919 = vmatprep.subr.mxu0 0.0
    %920 = vmatpush1.msra.mxu0 %v564
    %921 = vmatprep.subr.mxu0 0.0
    %922 = vmatpush1.msra.mxu0 %v563
    %923 = vmatprep.subr.mxu0 0.0
    %924 = vmatpush1.msra.mxu0 %v562
    %925 = vmatprep.subr.mxu0 0.0
    %926 = vmatpush1.msra.mxu0 %v561
    %927 = vmatprep.subr.mxu0 0.0
    %928 = vmatpush1.msra.mxu0 %v560
    %929 = vmatprep.subr.mxu0 0.0
    %930 = vmatpush1.msra.mxu0 %v559
    %931 = vmatprep.subr.mxu0 0.0
    %932 = vmatpush1.msra.mxu0 %v558
    %933 = vmatprep.subr.mxu0 0.0
    %934 = vmatpush1.msra.mxu0 %v557
    %935 = vmatprep.subr.mxu0 0.0
    %936 = vmatpush1.msra.mxu0 %v556
    %937 = vmatprep.subr.mxu0 0.0
    %938 = vmatpush1.msra.mxu0 %v555
    %939 = vmatprep.subr.mxu0 0.0
    %940 = vmatpush1.msra.mxu0 %v554
    %941 = vmatprep.subr.mxu0 0.0
    %942 = vmatpush1.msra.mxu0 %v553
    %943 = vmatprep.subr.mxu0 0.0
    %944 = vmatpush2.msra.mxu0 %v584
    %945 = vmatprep.subr.mxu0 0.0
    %946 = vmatpush2.msra.mxu0 %v583
    %947 = vmatprep.subr.mxu0 0.0
    %948 = vmatpush2.msra.mxu0 %v582
    %949 = vmatprep.subr.mxu0 0.0
    %950 = vmatpush2.msra.mxu0 %v581
    %951 = vmatprep.subr.mxu0 0.0
    %952 = vmatpush2.msra.mxu0 %v580
    %953 = vmatprep.subr.mxu0 0.0
    %954 = vmatpush2.msra.mxu0 %v579
    %955 = vmatprep.subr.mxu0 0.0
    %956 = vmatpush2.msra.mxu0 %v578
    %957 = vmatprep.subr.mxu0 0.0
    %958 = vmatpush2.msra.mxu0 %v577
    %959 = vmatprep.subr.mxu0 0.0
    %960 = vmatpush2.msra.mxu0 %v576
    %961 = vmatprep.subr.mxu0 0.0
    %962 = vmatpush2.msra.mxu0 %v575
    %963 = vmatprep.subr.mxu0 0.0
    %964 = vmatpush2.msra.mxu0 %v574
    %965 = vmatprep.subr.mxu0 0.0
    %966 = vmatpush2.msra.mxu0 %v573
    %967 = vmatprep.subr.mxu0 0.0
    %968 = vmatpush2.msra.mxu0 %v572
    %969 = vmatprep.subr.mxu0 0.0
    %970 = vmatpush2.msra.mxu0 %v571
    %971 = vmatprep.subr.mxu0 0.0
    %972 = vmatpush2.msra.mxu0 %v570
    %973 = vmatprep.subr.mxu0 0.0
    %974 = vmatpush2.msra.mxu0 %v569
    %975 = vmatprep.mubr.f32.mxu0 %v225
    %976 = vmatmul.mubr.f32.gmra.mxu0 %v223
    %v977 = vpop.f32.mrf.mxu0
    %v978 = vadd.f32 %v908, %v977
    %v979 = vpop.f32.mrf.mxu0
    %980 = vdwg.mxu0
    %981 = vmatprep.subr.mxu0 0.0
    %982 = vmatpush1.msra.mxu0 %v600
    %983 = vmatprep.subr.mxu0 0.0
    %984 = vmatpush1.msra.mxu0 %v599
    %985 = vmatprep.subr.mxu0 0.0
    %986 = vmatpush1.msra.mxu0 %v598
    %987 = vmatprep.subr.mxu0 0.0
    %988 = vmatpush1.msra.mxu0 %v597
    %989 = vmatprep.subr.mxu0 0.0
    %990 = vmatpush1.msra.mxu0 %v596
    %991 = vmatprep.subr.mxu0 0.0
    %992 = vmatpush1.msra.mxu0 %v595
    %993 = vmatprep.subr.mxu0 0.0
    %994 = vmatpush1.msra.mxu0 %v594
    %995 = vmatprep.subr.mxu0 0.0
    %996 = vmatpush1.msra.mxu0 %v593
    %997 = vmatprep.subr.mxu0 0.0
    %998 = vmatpush1.msra.mxu0 %v592
    %999 = vmatprep.subr.mxu0 0.0
    %1000 = vmatpush1.msra.mxu0 %v591
    %1001 = vmatprep.subr.mxu0 0.0
    %1002 = vmatpush1.msra.mxu0 %v590
    %1003 = vmatprep.subr.mxu0 0.0
    %1004 = vmatpush1.msra.mxu0 %v589
    %1005 = vmatprep.subr.mxu0 0.0
    %1006 = vmatpush1.msra.mxu0 %v588
    %1007 = vmatprep.subr.mxu0 0.0
    %1008 = vmatpush1.msra.mxu0 %v587
    %1009 = vmatprep.subr.mxu0 0.0
    %1010 = vmatpush1.msra.mxu0 %v586
    %1011 = vmatprep.subr.mxu0 0.0
    %1012 = vmatpush1.msra.mxu0 %v585
    %1013 = vmatprep.subr.mxu0 0.0
    %1014 = vmatpush2.msra.mxu0 %v616
    %1015 = vmatprep.subr.mxu0 0.0
    %1016 = vmatpush2.msra.mxu0 %v615
    %1017 = vmatprep.subr.mxu0 0.0
    %1018 = vmatpush2.msra.mxu0 %v614
    %1019 = vmatprep.subr.mxu0 0.0
    %1020 = vmatpush2.msra.mxu0 %v613
    %1021 = vmatprep.subr.mxu0 0.0
    %1022 = vmatpush2.msra.mxu0 %v612
    %1023 = vmatprep.subr.mxu0 0.0
    %1024 = vmatpush2.msra.mxu0 %v611
    %1025 = vmatprep.subr.mxu0 0.0
    %1026 = vmatpush2.msra.mxu0 %v610
    %1027 = vmatprep.subr.mxu0 0.0
    %1028 = vmatpush2.msra.mxu0 %v609
    %1029 = vmatprep.subr.mxu0 0.0
    %1030 = vmatpush2.msra.mxu0 %v608
    %1031 = vmatprep.subr.mxu0 0.0
    %1032 = vmatpush2.msra.mxu0 %v607
    %1033 = vmatprep.subr.mxu0 0.0
    %1034 = vmatpush2.msra.mxu0 %v606
    %1035 = vmatprep.subr.mxu0 0.0
    %1036 = vmatpush2.msra.mxu0 %v605
    %1037 = vmatprep.subr.mxu0 0.0
    %1038 = vmatpush2.msra.mxu0 %v604
    %1039 = vmatprep.subr.mxu0 0.0
    %1040 = vmatpush2.msra.mxu0 %v603
    %1041 = vmatprep.subr.mxu0 0.0
    %1042 = vmatpush2.msra.mxu0 %v602
    %1043 = vmatprep.subr.mxu0 0.0
    %1044 = vmatpush2.msra.mxu0 %v601
    %1045 = vmatprep.mubr.f32.mxu0 %v308
    %1046 = vmatmul.mubr.f32.gmra.mxu0 %v306
    %v1047 = vpop.f32.mrf.mxu0
    %v1048 = vadd.f32 %v978, %v1047
    %v1049 = vpop.f32.mrf.mxu0
    %1050 = vdwg.mxu0
    %1051 = vmatprep.subr.mxu0 0.0
    %1052 = vmatpush1.msra.mxu0 %v632
    %1053 = vmatprep.subr.mxu0 0.0
    %1054 = vmatpush1.msra.mxu0 %v631
    %1055 = vmatprep.subr.mxu0 0.0
    %1056 = vmatpush1.msra.mxu0 %v630
    %1057 = vmatprep.subr.mxu0 0.0
    %1058 = vmatpush1.msra.mxu0 %v629
    %1059 = vmatprep.subr.mxu0 0.0
    %1060 = vmatpush1.msra.mxu0 %v628
    %1061 = vmatprep.subr.mxu0 0.0
    %1062 = vmatpush1.msra.mxu0 %v627
    %1063 = vmatprep.subr.mxu0 0.0
    %1064 = vmatpush1.msra.mxu0 %v626
    %1065 = vmatprep.subr.mxu0 0.0
    %1066 = vmatpush1.msra.mxu0 %v625
    %1067 = vmatprep.subr.mxu0 0.0
    %1068 = vmatpush1.msra.mxu0 %v624
    %1069 = vmatprep.subr.mxu0 0.0
    %1070 = vmatpush1.msra.mxu0 %v623
    %1071 = vmatprep.subr.mxu0 0.0
    %1072 = vmatpush1.msra.mxu0 %v622
    %1073 = vmatprep.subr.mxu0 0.0
    %1074 = vmatpush1.msra.mxu0 %v621
    %1075 = vmatprep.subr.mxu0 0.0
    %1076 = vmatpush1.msra.mxu0 %v620
    %1077 = vmatprep.subr.mxu0 0.0
    %1078 = vmatpush1.msra.mxu0 %v619
    %1079 = vmatprep.subr.mxu0 0.0
    %1080 = vmatpush1.msra.mxu0 %v618
    %1081 = vmatprep.subr.mxu0 0.0
    %1082 = vmatpush1.msra.mxu0 %v617
    %1083 = vmatprep.subr.mxu0 0.0
    %1084 = vmatpush2.msra.mxu0 %v648
    %1085 = vmatprep.subr.mxu0 0.0
    %1086 = vmatpush2.msra.mxu0 %v647
    %1087 = vmatprep.subr.mxu0 0.0
    %1088 = vmatpush2.msra.mxu0 %v646
    %1089 = vmatprep.subr.mxu0 0.0
    %1090 = vmatpush2.msra.mxu0 %v645
    %1091 = vmatprep.subr.mxu0 0.0
    %1092 = vmatpush2.msra.mxu0 %v644
    %1093 = vmatprep.subr.mxu0 0.0
    %1094 = vmatpush2.msra.mxu0 %v643
    %1095 = vmatprep.subr.mxu0 0.0
    %1096 = vmatpush2.msra.mxu0 %v642
    %1097 = vmatprep.subr.mxu0 0.0
    %1098 = vmatpush2.msra.mxu0 %v641
    %1099 = vmatprep.subr.mxu0 0.0
    %1100 = vmatpush2.msra.mxu0 %v640
    %1101 = vmatprep.subr.mxu0 0.0
    %1102 = vmatpush2.msra.mxu0 %v639
    %1103 = vmatprep.subr.mxu0 0.0
    %1104 = vmatpush2.msra.mxu0 %v638
    %1105 = vmatprep.subr.mxu0 0.0
    %1106 = vmatpush2.msra.mxu0 %v637
    %1107 = vmatprep.subr.mxu0 0.0
    %1108 = vmatpush2.msra.mxu0 %v636
    %1109 = vmatprep.subr.mxu0 0.0
    %1110 = vmatpush2.msra.mxu0 %v635
    %1111 = vmatprep.subr.mxu0 0.0
    %1112 = vmatpush2.msra.mxu0 %v634
    %1113 = vmatprep.subr.mxu0 0.0
    %1114 = vmatpush2.msra.mxu0 %v633
    %1115 = vmatprep.mubr.f32.mxu0 %v391
    %1116 = vmatmul.mubr.f32.gmra.mxu0 %v389
    %v1117 = vpop.f32.mrf.mxu0
    %v1118 = vadd.f32 %v1048, %v1117
    %v1119 = vpop.f32.mrf.mxu0
    %1120 = vdwg.mxu0
    %v1121 = vmul.f32 %v1118, 0.2
    %v1122 = vmax.f32 %v1118, %v1121
    %v1123 = vld [vmem:[%s3] sm:$0xff]
    %v1124 = vmul.f32 %v1122, %v1123
    %1125 = vmatprep.subr.mxu0 %v834
    %1126 = vmatpush1.msra.mxu0 %v833
    %1127 = vmatprep.subr.mxu0 %v826
    %1128 = vmatpush1.msra.mxu0 %v825
    %1129 = vmatprep.subr.mxu0 %v818
    %1130 = vmatpush1.msra.mxu0 %v817
    %1131 = vmatprep.subr.mxu0 %v810
    %1132 = vmatpush1.msra.mxu0 %v809
    %1133 = vmatprep.subr.mxu0 %v802
    %1134 = vmatpush1.msra.mxu0 %v801
    %1135 = vmatprep.subr.mxu0 %v794
    %1136 = vmatpush1.msra.mxu0 %v793
    %1137 = vmatprep.subr.mxu0 %v786
    %1138 = vmatpush1.msra.mxu0 %v785
    %1139 = vmatprep.subr.mxu0 %v778
    %1140 = vmatpush1.msra.mxu0 %v777
    %1141 = vmatprep.subr.mxu0 %v770
    %1142 = vmatpush1.msra.mxu0 %v769
    %1143 = vmatprep.subr.mxu0 %v762
    %1144 = vmatpush1.msra.mxu0 %v761
    %1145 = vmatprep.subr.mxu0 %v754
    %1146 = vmatpush1.msra.mxu0 %v753
    %1147 = vmatprep.subr.mxu0 %v746
    %1148 = vmatpush1.msra.mxu0 %v745
    %1149 = vmatprep.subr.mxu0 %v738
    %1150 = vmatpush1.msra.mxu0 %v737
    %1151 = vmatprep.subr.mxu0 %v730
    %1152 = vmatpush1.msra.mxu0 %v729
    %1153 = vmatprep.subr.mxu0 %v722
    %1154 = vmatpush1.msra.mxu0 %v721
    %1155 = vmatprep.subr.mxu0 %v714
    %1156 = vmatpush1.msra.mxu0 %v713
    %1157 = vmatprep.subr.mxu0 0.0
    %1158 = vmatpush2.msra.mxu0 0.0
    %1159 = vmatprep.subr.mxu0 0.0
    %1160 = vmatpush2.msra.mxu0 0.0
    %1161 = vmatprep.subr.mxu0 0.0
    %1162 = vmatpush2.msra.mxu0 0.0
    %1163 = vmatprep.subr.mxu0 0.0
    %1164 = vmatpush2.msra.mxu0 0.0
    %1165 = vmatprep.subr.mxu0 0.0
    %1166 = vmatpush2.msra.mxu0 0.0
    %1167 = vmatprep.subr.mxu0 0.0
    %1168 = vmatpush2.msra.mxu0 0.0
    %1169 = vmatprep.subr.mxu0 0.0
    %1170 = vmatpush2.msra.mxu0 0.0
    %1171 = vmatprep.subr.mxu0 0.0
    %1172 = vmatpush2.msra.mxu0 0.0
    %1173 = vmatprep.subr.mxu0 0.0
    %1174 = vmatpush2.msra.mxu0 0.0
    %1175 = vmatprep.subr.mxu0 0.0
    %1176 = vmatpush2.msra.mxu0 0.0
    %1177 = vmatprep.subr.mxu0 0.0
    %1178 = vmatpush2.msra.mxu0 0.0
    %1179 = vmatprep.subr.mxu0 0.0
    %1180 = vmatpush2.msra.mxu0 0.0
    %1181 = vmatprep.subr.mxu0 0.0
    %1182 = vmatpush2.msra.mxu0 0.0
    %1183 = vmatprep.subr.mxu0 0.0
    %1184 = vmatpush2.msra.mxu0 0.0
    %1185 = vmatprep.subr.mxu0 0.0
    %1186 = vmatpush2.msra.mxu0 0.0
    %1187 = vmatprep.subr.mxu0 0.0
    %1188 = vmatpush2.msra.mxu0 0.0
    %1189 = vmatprep.mubr.f32.mxu0 0.0
    %1190 = vmatmul.mubr.f32.gmra.mxu0 %v1124
    %v1191 = vpop.f32.mrf.mxu0
    %v1192 = vadd.f32 0.0, %v1191
    %v1193 = vpop.f32.mrf.mxu0
    %v1194 = vadd.f32 0.0, %v1193
    %1195 = vdwg.mxu0
    %1196 = vmatprep.subr.mxu0 %v836
    %1197 = vmatpush1.msra.mxu0 %v835
    %1198 = vmatprep.subr.mxu0 %v828
    %1199 = vmatpush1.msra.mxu0 %v827
    %1200 = vmatprep.subr.mxu0 %v820
    %1201 = vmatpush1.msra.mxu0 %v819
    %1202 = vmatprep.subr.mxu0 %v812
    %1203 = vmatpush1.msra.mxu0 %v811
    %1204 = vmatprep.subr.mxu0 %v804
    %1205 = vmatpush1.msra.mxu0 %v803
    %1206 = vmatprep.subr.mxu0 %v796
    %1207 = vmatpush1.msra.mxu0 %v795
    %1208 = vmatprep.subr.mxu0 %v788
    %1209 = vmatpush1.msra.mxu0 %v787
    %1210 = vmatprep.subr.mxu0 %v780
    %1211 = vmatpush1.msra.mxu0 %v779
    %1212 = vmatprep.subr.mxu0 %v772
    %1213 = vmatpush1.msra.mxu0 %v771
    %1214 = vmatprep.subr.mxu0 %v764
    %1215 = vmatpush1.msra.mxu0 %v763
    %1216 = vmatprep.subr.mxu0 %v756
    %1217 = vmatpush1.msra.mxu0 %v755
    %1218 = vmatprep.subr.mxu0 %v748
    %1219 = vmatpush1.msra.mxu0 %v747
    %1220 = vmatprep.subr.mxu0 %v740
    %1221 = vmatpush1.msra.mxu0 %v739
    %1222 = vmatprep.subr.mxu0 %v732
    %1223 = vmatpush1.msra.mxu0 %v731
    %1224 = vmatprep.subr.mxu0 %v724
    %1225 = vmatpush1.msra.mxu0 %v723
    %1226 = vmatprep.subr.mxu0 %v716
    %1227 = vmatpush1.msra.mxu0 %v715
    %1228 = vmatprep.subr.mxu0 0.0
    %1229 = vmatpush2.msra.mxu0 0.0
    %1230 = vmatprep.subr.mxu0 0.0
    %1231 = vmatpush2.msra.mxu0 0.0
    %1232 = vmatprep.subr.mxu0 0.0
    %1233 = vmatpush2.msra.mxu0 0.0
    %1234 = vmatprep.subr.mxu0 0.0
    %1235 = vmatpush2.msra.mxu0 0.0
    %1236 = vmatprep.subr.mxu0 0.0
    %1237 = vmatpush2.msra.mxu0 0.0
    %1238 = vmatprep.subr.mxu0 0.0
    %1239 = vmatpush2.msra.mxu0 0.0
    %1240 = vmatprep.subr.mxu0 0.0
    %1241 = vmatpush2.msra.mxu0 0.0
    %1242 = vmatprep.subr.mxu0 0.0
    %1243 = vmatpush2.msra.mxu0 0.0
    %1244 = vmatprep.subr.mxu0 0.0
    %1245 = vmatpush2.msra.mxu0 0.0
    %1246 = vmatprep.subr.mxu0 0.0
    %1247 = vmatpush2.msra.mxu0 0.0
    %1248 = vmatprep.subr.mxu0 0.0
    %1249 = vmatpush2.msra.mxu0 0.0
    %1250 = vmatprep.subr.mxu0 0.0
    %1251 = vmatpush2.msra.mxu0 0.0
    %1252 = vmatprep.subr.mxu0 0.0
    %1253 = vmatpush2.msra.mxu0 0.0
    %1254 = vmatprep.subr.mxu0 0.0
    %1255 = vmatpush2.msra.mxu0 0.0
    %1256 = vmatprep.subr.mxu0 0.0
    %1257 = vmatpush2.msra.mxu0 0.0
    %1258 = vmatprep.subr.mxu0 0.0
    %1259 = vmatpush2.msra.mxu0 0.0
    %1260 = vmatprep.mubr.f32.mxu0 0.0
    %1261 = vmatmul.mubr.f32.gmra.mxu0 %v1124
    %v1262 = vpop.f32.mrf.mxu0
    %v1263 = vadd.f32 0.0, %v1262
    %v1264 = vpop.f32.mrf.mxu0
    %v1265 = vadd.f32 0.0, %v1264
    %1266 = vdwg.mxu0
    %1267 = vmatprep.subr.mxu0 %v838
    %1268 = vmatpush1.msra.mxu0 %v837
    %1269 = vmatprep.subr.mxu0 %v830
    %1270 = vmatpush1.msra.mxu0 %v829
    %1271 = vmatprep.subr.mxu0 %v822
    %1272 = vmatpush1.msra.mxu0 %v821
    %1273 = vmatprep.subr.mxu0 %v814
    %1274 = vmatpush1.msra.mxu0 %v813
    %1275 = vmatprep.subr.mxu0 %v806
    %1276 = vmatpush1.msra.mxu0 %v805
    %1277 = vmatprep.subr.mxu0 %v798
    %1278 = vmatpush1.msra.mxu0 %v797
    %1279 = vmatprep.subr.mxu0 %v790
    %1280 = vmatpush1.msra.mxu0 %v789
    %1281 = vmatprep.subr.mxu0 %v782
    %1282 = vmatpush1.msra.mxu0 %v781
    %1283 = vmatprep.subr.mxu0 %v774
    %1284 = vmatpush1.msra.mxu0 %v773
    %1285 = vmatprep.subr.mxu0 %v766
    %1286 = vmatpush1.msra.mxu0 %v765
    %1287 = vmatprep.subr.mxu0 %v758
    %1288 = vmatpush1.msra.mxu0 %v757
    %1289 = vmatprep.subr.mxu0 %v750
    %1290 = vmatpush1.msra.mxu0 %v749
    %1291 = vmatprep.subr.mxu0 %v742
    %1292 = vmatpush1.msra.mxu0 %v741
    %1293 = vmatprep.subr.mxu0 %v734
    %1294 = vmatpush1.msra.mxu0 %v733
    %1295 = vmatprep.subr.mxu0 %v726
    %1296 = vmatpush1.msra.mxu0 %v725
    %1297 = vmatprep.subr.mxu0 %v718
    %1298 = vmatpush1.msra.mxu0 %v717
    %1299 = vmatprep.subr.mxu0 0.0
    %1300 = vmatpush2.msra.mxu0 0.0
    %1301 = vmatprep.subr.mxu0 0.0
    %1302 = vmatpush2.msra.mxu0 0.0
    %1303 = vmatprep.subr.mxu0 0.0
    %1304 = vmatpush2.msra.mxu0 0.0
    %1305 = vmatprep.subr.mxu0 0.0
    %1306 = vmatpush2.msra.mxu0 0.0
    %1307 = vmatprep.subr.mxu0 0.0
    %1308 = vmatpush2.msra.mxu0 0.0
    %1309 = vmatprep.subr.mxu0 0.0
    %1310 = vmatpush2.msra.mxu0 0.0
    %1311 = vmatprep.subr.mxu0 0.0
    %1312 = vmatpush2.msra.mxu0 0.0
    %1313 = vmatprep.subr.mxu0 0.0
    %1314 = vmatpush2.msra.mxu0 0.0
    %1315 = vmatprep.subr.mxu0 0.0
    %1316 = vmatpush2.msra.mxu0 0.0
    %1317 = vmatprep.subr.mxu0 0.0
    %1318 = vmatpush2.msra.mxu0 0.0
    %1319 = vmatprep.subr.mxu0 0.0
    %1320 = vmatpush2.msra.mxu0 0.0
    %1321 = vmatprep.subr.mxu0 0.0
    %1322 = vmatpush2.msra.mxu0 0.0
    %1323 = vmatprep.subr.mxu0 0.0
    %1324 = vmatpush2.msra.mxu0 0.0
    %1325 = vmatprep.subr.mxu0 0.0
    %1326 = vmatpush2.msra.mxu0 0.0
    %1327 = vmatprep.subr.mxu0 0.0
    %1328 = vmatpush2.msra.mxu0 0.0
    %1329 = vmatprep.subr.mxu0 0.0
    %1330 = vmatpush2.msra.mxu0 0.0
    %1331 = vmatprep.mubr.f32.mxu0 0.0
    %1332 = vmatmul.mubr.f32.gmra.mxu0 %v1124
    %v1333 = vpop.f32.mrf.mxu0
    %v1334 = vadd.f32 0.0, %v1333
    %v1335 = vpop.f32.mrf.mxu0
    %v1336 = vadd.f32 0.0, %v1335
    %1337 = vdwg.mxu0
    %1338 = vmatprep.subr.mxu0 %v840
    %1339 = vmatpush1.msra.mxu0 %v839
    %1340 = vmatprep.subr.mxu0 %v832
    %1341 = vmatpush1.msra.mxu0 %v831
    %1342 = vmatprep.subr.mxu0 %v824
    %1343 = vmatpush1.msra.mxu0 %v823
    %1344 = vmatprep.subr.mxu0 %v816
    %1345 = vmatpush1.msra.mxu0 %v815
    %1346 = vmatprep.subr.mxu0 %v808
    %1347 = vmatpush1.msra.mxu0 %v807
    %1348 = vmatprep.subr.mxu0 %v800
    %1349 = vmatpush1.msra.mxu0 %v799
    %1350 = vmatprep.subr.mxu0 %v792
    %1351 = vmatpush1.msra.mxu0 %v791
    %1352 = vmatprep.subr.mxu0 %v784
    %1353 = vmatpush1.msra.mxu0 %v783
    %1354 = vmatprep.subr.mxu0 %v776
    %1355 = vmatpush1.msra.mxu0 %v775
    %1356 = vmatprep.subr.mxu0 %v768
    %1357 = vmatpush1.msra.mxu0 %v767
    %1358 = vmatprep.subr.mxu0 %v760
    %1359 = vmatpush1.msra.mxu0 %v759
    %1360 = vmatprep.subr.mxu0 %v752
    %1361 = vmatpush1.msra.mxu0 %v751
    %1362 = vmatprep.subr.mxu0 %v744
    %1363 = vmatpush1.msra.mxu0 %v743
    %1364 = vmatprep.subr.mxu0 %v736
    %1365 = vmatpush1.msra.mxu0 %v735
    %1366 = vmatprep.subr.mxu0 %v728
    %1367 = vmatpush1.msra.mxu0 %v727
    %1368 = vmatprep.subr.mxu0 %v720
    %1369 = vmatpush1.msra.mxu0 %v719
    %1370 = vmatprep.subr.mxu0 0.0
    %1371 = vmatpush2.msra.mxu0 0.0
    %1372 = vmatprep.subr.mxu0 0.0
    %1373 = vmatpush2.msra.mxu0 0.0
    %1374 = vmatprep.subr.mxu0 0.0
    %1375 = vmatpush2.msra.mxu0 0.0
    %1376 = vmatprep.subr.mxu0 0.0
    %1377 = vmatpush2.msra.mxu0 0.0
    %1378 = vmatprep.subr.mxu0 0.0
    %1379 = vmatpush2.msra.mxu0 0.0
    %1380 = vmatprep.subr.mxu0 0.0
    %1381 = vmatpush2.msra.mxu0 0.0
    %1382 = vmatprep.subr.mxu0 0.0
    %1383 = vmatpush2.msra.mxu0 0.0
    %1384 = vmatprep.subr.mxu0 0.0
    %1385 = vmatpush2.msra.mxu0 0.0
    %1386 = vmatprep.subr.mxu0 0.0
    %1387 = vmatpush2.msra.mxu0 0.0
    %1388 = vmatprep.subr.mxu0 0.0
    %1389 = vmatpush2.msra.mxu0 0.0
    %1390 = vmatprep.subr.mxu0 0.0
    %1391 = vmatpush2.msra.mxu0 0.0
    %1392 = vmatprep.subr.mxu0 0.0
    %1393 = vmatpush2.msra.mxu0 0.0
    %1394 = vmatprep.subr.mxu0 0.0
    %1395 = vmatpush2.msra.mxu0 0.0
    %1396 = vmatprep.subr.mxu0 0.0
    %1397 = vmatpush2.msra.mxu0 0.0
    %1398 = vmatprep.subr.mxu0 0.0
    %1399 = vmatpush2.msra.mxu0 0.0
    %1400 = vmatprep.subr.mxu0 0.0
    %1401 = vmatpush2.msra.mxu0 0.0
    %1402 = vmatprep.mubr.f32.mxu0 0.0
    %1403 = vmatmul.mubr.f32.gmra.mxu0 %v1124
    %v1404 = vpop.f32.mrf.mxu0
    %v1405 = vadd.f32 0.0, %v1404
    %v1406 = vpop.f32.mrf.mxu0
    %v1407 = vadd.f32 0.0, %v1406
    %1408 = vdwg.mxu0
    %v1409 = vld [vmem:[%s5] sm:$0xff]
    %v1410 = vld [vmem:[%s5 + $0x8] sm:$0xff]
    %v1412 = vsel %vm51, %v1409, 0
    %v1415 = vsel %vm51, %v1410, 0
    %1417 = vmatprep.subr.mxu0 0.0
    %1418 = vmatpush1.msra.mxu0 0.0
    %1419 = vmatprep.subr.mxu0 0.0
    %1420 = vmatpush1.msra.mxu0 0.0
    %1421 = vmatprep.subr.mxu0 0.0
    %1422 = vmatpush1.msra.mxu0 0.0
    %1423 = vmatprep.subr.mxu0 0.0
    %1424 = vmatpush1.msra.mxu0 0.0
    %1425 = vmatprep.subr.mxu0 0.0
    %1426 = vmatpush1.msra.mxu0 0.0
    %1427 = vmatprep.subr.mxu0 0.0
    %1428 = vmatpush1.msra.mxu0 0.0
    %1429 = vmatprep.subr.mxu0 0.0
    %1430 = vmatpush1.msra.mxu0 0.0
    %1431 = vmatprep.subr.mxu0 0.0
    %1432 = vmatpush1.msra.mxu0 0.0
    %1433 = vmatprep.subr.mxu0 0.0
    %1434 = vmatpush1.msra.mxu0 0.0
    %1435 = vmatprep.subr.mxu0 0.0
    %1436 = vmatpush1.msra.mxu0 0.0
    %1437 = vmatprep.subr.mxu0 0.0
    %1438 = vmatpush1.msra.mxu0 0.0
    %1439 = vmatprep.subr.mxu0 0.0
    %1440 = vmatpush1.msra.mxu0 0.0
    %1441 = vmatprep.subr.mxu0 0.0
    %1442 = vmatpush1.msra.mxu0 0.0
    %1443 = vmatprep.subr.mxu0 0.0
    %1444 = vmatpush1.msra.mxu0 0.0
    %1445 = vmatprep.subr.mxu0 0.0
    %1446 = vmatpush1.msra.mxu0 0.0
    %1447 = vmatprep.subr.mxu0 %v1194
    %1448 = vmatpush1.msra.mxu0 %v1192
    %1449 = vmatprep.subr.mxu0 0.0
    %1450 = vmatpush2.msra.mxu0 0.0
    %1451 = vmatprep.subr.mxu0 0.0
    %1452 = vmatpush2.msra.mxu0 0.0
    %1453 = vmatprep.subr.mxu0 0.0
    %1454 = vmatpush2.msra.mxu0 0.0
    %1455 = vmatprep.subr.mxu0 0.0
    %1456 = vmatpush2.msra.mxu0 0.0
    %1457 = vmatprep.subr.mxu0 0.0
    %1458 = vmatpush2.msra.mxu0 0.0
    %1459 = vmatprep.subr.mxu0 0.0
    %1460 = vmatpush2.msra.mxu0 0.0
    %1461 = vmatprep.subr.mxu0 0.0
    %1462 = vmatpush2.msra.mxu0 0.0
    %1463 = vmatprep.subr.mxu0 0.0
    %1464 = vmatpush2.msra.mxu0 0.0
    %1465 = vmatprep.subr.mxu0 0.0
    %1466 = vmatpush2.msra.mxu0 0.0
    %1467 = vmatprep.subr.mxu0 0.0
    %1468 = vmatpush2.msra.mxu0 0.0
    %1469 = vmatprep.subr.mxu0 0.0
    %1470 = vmatpush2.msra.mxu0 0.0
    %1471 = vmatprep.subr.mxu0 0.0
    %1472 = vmatpush2.msra.mxu0 0.0
    %1473 = vmatprep.subr.mxu0 0.0
    %1474 = vmatpush2.msra.mxu0 0.0
    %1475 = vmatprep.subr.mxu0 0.0
    %1476 = vmatpush2.msra.mxu0 0.0
    %1477 = vmatprep.subr.mxu0 0.0
    %1478 = vmatpush2.msra.mxu0 0.0
    %1479 = vmatprep.subr.mxu0 0.0
    %1480 = vmatpush2.msra.mxu0 0.0
    %1481 = vmatprep.mubr.f32.mxu0 0.0
    %1482 = vmatmul.mubr.f32.gmra.mxu0 %v1412
    %v1483 = vpop.f32.mrf.mxu0
    %v1484 = vadd.f32 %v128, %v1483
    %v1485 = vpop.f32.mrf.mxu0
    %v1486 = vadd.f32 %v130, %v1485
    %1487 = vmatprep.mubr.f32.mxu0 0.0
    %1488 = vmatmul.mubr.f32.gmra.mxu0 %v1415
    %v1489 = vpop.f32.mrf.mxu0
    %v1490 = vadd.f32 %v134, %v1489
    %v1491 = vpop.f32.mrf.mxu0
    %v1492 = vadd.f32 %v136, %v1491
    %1493 = vdwg.mxu0
    %1494 = vmatprep.subr.mxu0 0.0
    %1495 = vmatpush1.msra.mxu0 0.0
    %1496 = vmatprep.subr.mxu0 0.0
    %1497 = vmatpush1.msra.mxu0 0.0
    %1498 = vmatprep.subr.mxu0 0.0
    %1499 = vmatpush1.msra.mxu0 0.0
    %1500 = vmatprep.subr.mxu0 0.0
    %1501 = vmatpush1.msra.mxu0 0.0
    %1502 = vmatprep.subr.mxu0 0.0
    %1503 = vmatpush1.msra.mxu0 0.0
    %1504 = vmatprep.subr.mxu0 0.0
    %1505 = vmatpush1.msra.mxu0 0.0
    %1506 = vmatprep.subr.mxu0 0.0
    %1507 = vmatpush1.msra.mxu0 0.0
    %1508 = vmatprep.subr.mxu0 0.0
    %1509 = vmatpush1.msra.mxu0 0.0
    %1510 = vmatprep.subr.mxu0 0.0
    %1511 = vmatpush1.msra.mxu0 0.0
    %1512 = vmatprep.subr.mxu0 0.0
    %1513 = vmatpush1.msra.mxu0 0.0
    %1514 = vmatprep.subr.mxu0 0.0
    %1515 = vmatpush1.msra.mxu0 0.0
    %1516 = vmatprep.subr.mxu0 0.0
    %1517 = vmatpush1.msra.mxu0 0.0
    %1518 = vmatprep.subr.mxu0 0.0
    %1519 = vmatpush1.msra.mxu0 0.0
    %1520 = vmatprep.subr.mxu0 0.0
    %1521 = vmatpush1.msra.mxu0 0.0
    %1522 = vmatprep.subr.mxu0 0.0
    %1523 = vmatpush1.msra.mxu0 0.0
    %1524 = vmatprep.subr.mxu0 %v1265
    %1525 = vmatpush1.msra.mxu0 %v1263
    %1526 = vmatprep.subr.mxu0 0.0
    %1527 = vmatpush2.msra.mxu0 0.0
    %1528 = vmatprep.subr.mxu0 0.0
    %1529 = vmatpush2.msra.mxu0 0.0
    %1530 = vmatprep.subr.mxu0 0.0
    %1531 = vmatpush2.msra.mxu0 0.0
    %1532 = vmatprep.subr.mxu0 0.0
    %1533 = vmatpush2.msra.mxu0 0.0
    %1534 = vmatprep.subr.mxu0 0.0
    %1535 = vmatpush2.msra.mxu0 0.0
    %1536 = vmatprep.subr.mxu0 0.0
    %1537 = vmatpush2.msra.mxu0 0.0
    %1538 = vmatprep.subr.mxu0 0.0
    %1539 = vmatpush2.msra.mxu0 0.0
    %1540 = vmatprep.subr.mxu0 0.0
    %1541 = vmatpush2.msra.mxu0 0.0
    %1542 = vmatprep.subr.mxu0 0.0
    %1543 = vmatpush2.msra.mxu0 0.0
    %1544 = vmatprep.subr.mxu0 0.0
    %1545 = vmatpush2.msra.mxu0 0.0
    %1546 = vmatprep.subr.mxu0 0.0
    %1547 = vmatpush2.msra.mxu0 0.0
    %1548 = vmatprep.subr.mxu0 0.0
    %1549 = vmatpush2.msra.mxu0 0.0
    %1550 = vmatprep.subr.mxu0 0.0
    %1551 = vmatpush2.msra.mxu0 0.0
    %1552 = vmatprep.subr.mxu0 0.0
    %1553 = vmatpush2.msra.mxu0 0.0
    %1554 = vmatprep.subr.mxu0 0.0
    %1555 = vmatpush2.msra.mxu0 0.0
    %1556 = vmatprep.subr.mxu0 0.0
    %1557 = vmatpush2.msra.mxu0 0.0
    %1558 = vmatprep.mubr.f32.mxu0 0.0
    %1559 = vmatmul.mubr.f32.gmra.mxu0 %v1412
    %v1560 = vpop.f32.mrf.mxu0
    %v1561 = vadd.f32 %v211, %v1560
    %v1562 = vpop.f32.mrf.mxu0
    %v1563 = vadd.f32 %v213, %v1562
    %1564 = vmatprep.mubr.f32.mxu0 0.0
    %1565 = vmatmul.mubr.f32.gmra.mxu0 %v1415
    %v1566 = vpop.f32.mrf.mxu0
    %v1567 = vadd.f32 %v217, %v1566
    %v1568 = vpop.f32.mrf.mxu0
    %v1569 = vadd.f32 %v219, %v1568
    %1570 = vdwg.mxu0
    %1571 = vmatprep.subr.mxu0 0.0
    %1572 = vmatpush1.msra.mxu0 0.0
    %1573 = vmatprep.subr.mxu0 0.0
    %1574 = vmatpush1.msra.mxu0 0.0
    %1575 = vmatprep.subr.mxu0 0.0
    %1576 = vmatpush1.msra.mxu0 0.0
    %1577 = vmatprep.subr.mxu0 0.0
    %1578 = vmatpush1.msra.mxu0 0.0
    %1579 = vmatprep.subr.mxu0 0.0
    %1580 = vmatpush1.msra.mxu0 0.0
    %1581 = vmatprep.subr.mxu0 0.0
    %1582 = vmatpush1.msra.mxu0 0.0
    %1583 = vmatprep.subr.mxu0 0.0
    %1584 = vmatpush1.msra.mxu0 0.0
    %1585 = vmatprep.subr.mxu0 0.0
    %1586 = vmatpush1.msra.mxu0 0.0
    %1587 = vmatprep.subr.mxu0 0.0
    %1588 = vmatpush1.msra.mxu0 0.0
    %1589 = vmatprep.subr.mxu0 0.0
    %1590 = vmatpush1.msra.mxu0 0.0
    %1591 = vmatprep.subr.mxu0 0.0
    %1592 = vmatpush1.msra.mxu0 0.0
    %1593 = vmatprep.subr.mxu0 0.0
    %1594 = vmatpush1.msra.mxu0 0.0
    %1595 = vmatprep.subr.mxu0 0.0
    %1596 = vmatpush1.msra.mxu0 0.0
    %1597 = vmatprep.subr.mxu0 0.0
    %1598 = vmatpush1.msra.mxu0 0.0
    %1599 = vmatprep.subr.mxu0 0.0
    %1600 = vmatpush1.msra.mxu0 0.0
    %1601 = vmatprep.subr.mxu0 %v1336
    %1602 = vmatpush1.msra.mxu0 %v1334
    %1603 = vmatprep.subr.mxu0 0.0
    %1604 = vmatpush2.msra.mxu0 0.0
    %1605 = vmatprep.subr.mxu0 0.0
    %1606 = vmatpush2.msra.mxu0 0.0
    %1607 = vmatprep.subr.mxu0 0.0
    %1608 = vmatpush2.msra.mxu0 0.0
    %1609 = vmatprep.subr.mxu0 0.0
    %1610 = vmatpush2.msra.mxu0 0.0
    %1611 = vmatprep.subr.mxu0 0.0
    %1612 = vmatpush2.msra.mxu0 0.0
    %1613 = vmatprep.subr.mxu0 0.0
    %1614 = vmatpush2.msra.mxu0 0.0
    %1615 = vmatprep.subr.mxu0 0.0
    %1616 = vmatpush2.msra.mxu0 0.0
    %1617 = vmatprep.subr.mxu0 0.0
    %1618 = vmatpush2.msra.mxu0 0.0
    %1619 = vmatprep.subr.mxu0 0.0
    %1620 = vmatpush2.msra.mxu0 0.0
    %1621 = vmatprep.subr.mxu0 0.0
    %1622 = vmatpush2.msra.mxu0 0.0
    %1623 = vmatprep.subr.mxu0 0.0
    %1624 = vmatpush2.msra.mxu0 0.0
    %1625 = vmatprep.subr.mxu0 0.0
    %1626 = vmatpush2.msra.mxu0 0.0
    %1627 = vmatprep.subr.mxu0 0.0
    %1628 = vmatpush2.msra.mxu0 0.0
    %1629 = vmatprep.subr.mxu0 0.0
    %1630 = vmatpush2.msra.mxu0 0.0
    %1631 = vmatprep.subr.mxu0 0.0
    %1632 = vmatpush2.msra.mxu0 0.0
    %1633 = vmatprep.subr.mxu0 0.0
    %1634 = vmatpush2.msra.mxu0 0.0
    %1635 = vmatprep.mubr.f32.mxu0 0.0
    %1636 = vmatmul.mubr.f32.gmra.mxu0 %v1412
    %v1637 = vpop.f32.mrf.mxu0
    %v1638 = vadd.f32 %v294, %v1637
    %v1639 = vpop.f32.mrf.mxu0
    %v1640 = vadd.f32 %v296, %v1639
    %1641 = vmatprep.mubr.f32.mxu0 0.0
    %1642 = vmatmul.mubr.f32.gmra.mxu0 %v1415
    %v1643 = vpop.f32.mrf.mxu0
    %v1644 = vadd.f32 %v300, %v1643
    %v1645 = vpop.f32.mrf.mxu0
    %v1646 = vadd.f32 %v302, %v1645
    %1647 = vdwg.mxu0
    %1648 = vmatprep.subr.mxu0 0.0
    %1649 = vmatpush1.msra.mxu0 0.0
    %1650 = vmatprep.subr.mxu0 0.0
    %1651 = vmatpush1.msra.mxu0 0.0
    %1652 = vmatprep.subr.mxu0 0.0
    %1653 = vmatpush1.msra.mxu0 0.0
    %1654 = vmatprep.subr.mxu0 0.0
    %1655 = vmatpush1.msra.mxu0 0.0
    %1656 = vmatprep.subr.mxu0 0.0
    %1657 = vmatpush1.msra.mxu0 0.0
    %1658 = vmatprep.subr.mxu0 0.0
    %1659 = vmatpush1.msra.mxu0 0.0
    %1660 = vmatprep.subr.mxu0 0.0
    %1661 = vmatpush1.msra.mxu0 0.0
    %1662 = vmatprep.subr.mxu0 0.0
    %1663 = vmatpush1.msra.mxu0 0.0
    %1664 = vmatprep.subr.mxu0 0.0
    %1665 = vmatpush1.msra.mxu0 0.0
    %1666 = vmatprep.subr.mxu0 0.0
    %1667 = vmatpush1.msra.mxu0 0.0
    %1668 = vmatprep.subr.mxu0 0.0
    %1669 = vmatpush1.msra.mxu0 0.0
    %1670 = vmatprep.subr.mxu0 0.0
    %1671 = vmatpush1.msra.mxu0 0.0
    %1672 = vmatprep.subr.mxu0 0.0
    %1673 = vmatpush1.msra.mxu0 0.0
    %1674 = vmatprep.subr.mxu0 0.0
    %1675 = vmatpush1.msra.mxu0 0.0
    %1676 = vmatprep.subr.mxu0 0.0
    %1677 = vmatpush1.msra.mxu0 0.0
    %1678 = vmatprep.subr.mxu0 %v1407
    %1679 = vmatpush1.msra.mxu0 %v1405
    %1680 = vmatprep.subr.mxu0 0.0
    %1681 = vmatpush2.msra.mxu0 0.0
    %1682 = vmatprep.subr.mxu0 0.0
    %1683 = vmatpush2.msra.mxu0 0.0
    %1684 = vmatprep.subr.mxu0 0.0
    %1685 = vmatpush2.msra.mxu0 0.0
    %1686 = vmatprep.subr.mxu0 0.0
    %1687 = vmatpush2.msra.mxu0 0.0
    %1688 = vmatprep.subr.mxu0 0.0
    %1689 = vmatpush2.msra.mxu0 0.0
    %1690 = vmatprep.subr.mxu0 0.0
    %1691 = vmatpush2.msra.mxu0 0.0
    %1692 = vmatprep.subr.mxu0 0.0
    %1693 = vmatpush2.msra.mxu0 0.0
    %1694 = vmatprep.subr.mxu0 0.0
    %1695 = vmatpush2.msra.mxu0 0.0
    %1696 = vmatprep.subr.mxu0 0.0
    %1697 = vmatpush2.msra.mxu0 0.0
    %1698 = vmatprep.subr.mxu0 0.0
    %1699 = vmatpush2.msra.mxu0 0.0
    %1700 = vmatprep.subr.mxu0 0.0
    %1701 = vmatpush2.msra.mxu0 0.0
    %1702 = vmatprep.subr.mxu0 0.0
    %1703 = vmatpush2.msra.mxu0 0.0
    %1704 = vmatprep.subr.mxu0 0.0
    %1705 = vmatpush2.msra.mxu0 0.0
    %1706 = vmatprep.subr.mxu0 0.0
    %1707 = vmatpush2.msra.mxu0 0.0
    %1708 = vmatprep.subr.mxu0 0.0
    %1709 = vmatpush2.msra.mxu0 0.0
    %1710 = vmatprep.subr.mxu0 0.0
    %1711 = vmatpush2.msra.mxu0 0.0
    %1712 = vmatprep.mubr.f32.mxu0 0.0
    %1713 = vmatmul.mubr.f32.gmra.mxu0 %v1412
    %v1714 = vpop.f32.mrf.mxu0
    %v1715 = vadd.f32 %v377, %v1714
    %v1716 = vpop.f32.mrf.mxu0
    %v1717 = vadd.f32 %v379, %v1716
    %1718 = vmatprep.mubr.f32.mxu0 0.0
    %1719 = vmatmul.mubr.f32.gmra.mxu0 %v1415
    %v1720 = vpop.f32.mrf.mxu0
    %v1721 = vadd.f32 %v383, %v1720
    %v1722 = vpop.f32.mrf.mxu0
    %v1723 = vadd.f32 %v385, %v1722
    %1724 = vdwg.mxu0
    %v1725 = vld [vmem:[%s6] sm:$0xff]
    %v1726 = vld [vmem:[%s6 + $0x8] sm:$0xff]
    %1728 = vset.pattern.permute.xlu0 0
    %1729 = vperm.xlu0 %1728, %v1725
    %v1730 = vpop.permute.xlu0 %1729
    %1733 = vset.pattern.permute.xlu0 0
    %1734 = vperm.xlu0 %1733, %v1726
    %v1735 = vpop.permute.xlu0 %1734
    %v1737 = vadd.f32 %v1484, %v1730
    %v1738 = vadd.f32 %v1486, %v1730
    %v1739 = vadd.f32 %v1561, %v1730
    %v1740 = vadd.f32 %v1563, %v1730
    %v1741 = vadd.f32 %v1638, %v1730
    %v1742 = vadd.f32 %v1640, %v1730
    %v1743 = vadd.f32 %v1715, %v1730
    %v1744 = vadd.f32 %v1717, %v1730
    %v1745 = vadd.f32 %v1490, %v1735
    %v1746 = vadd.f32 %v1492, %v1735
    %v1747 = vadd.f32 %v1567, %v1735
    %v1748 = vadd.f32 %v1569, %v1735
    %v1749 = vadd.f32 %v1644, %v1735
    %v1750 = vadd.f32 %v1646, %v1735
    %v1751 = vadd.f32 %v1721, %v1735
    %v1752 = vadd.f32 %v1723, %v1735
    %v1753 = vmul.f32 %v1737, 0.2
    %v1754 = vmul.f32 %v1738, 0.2
    %v1755 = vmul.f32 %v1739, 0.2
    %v1756 = vmul.f32 %v1740, 0.2
    %v1757 = vmul.f32 %v1741, 0.2
    %v1758 = vmul.f32 %v1742, 0.2
    %v1759 = vmul.f32 %v1743, 0.2
    %v1760 = vmul.f32 %v1744, 0.2
    %v1761 = vmul.f32 %v1745, 0.2
    %v1762 = vmul.f32 %v1746, 0.2
    %v1763 = vmul.f32 %v1747, 0.2
    %v1764 = vmul.f32 %v1748, 0.2
    %v1765 = vmul.f32 %v1749, 0.2
    %v1766 = vmul.f32 %v1750, 0.2
    %v1767 = vmul.f32 %v1751, 0.2
    %v1768 = vmul.f32 %v1752, 0.2
    %v1769 = vmax.f32 %v1737, %v1753
    %v1770 = vmax.f32 %v1738, %v1754
    %v1771 = vmax.f32 %v1739, %v1755
    %v1772 = vmax.f32 %v1740, %v1756
    %v1773 = vmax.f32 %v1741, %v1757
    %v1774 = vmax.f32 %v1742, %v1758
    %v1775 = vmax.f32 %v1743, %v1759
    %v1776 = vmax.f32 %v1744, %v1760
    %v1777 = vmax.f32 %v1745, %v1761
    %v1778 = vmax.f32 %v1746, %v1762
    %v1779 = vmax.f32 %v1747, %v1763
    %v1780 = vmax.f32 %v1748, %v1764
    %v1781 = vmax.f32 %v1749, %v1765
    %v1782 = vmax.f32 %v1750, %v1766
    %v1783 = vmax.f32 %v1751, %v1767
    %v1784 = vmax.f32 %v1752, %v1768
    %1785 = vst [vmem:[%s7] sm:$0xff] %v1769
    %1786 = vst [vmem:[%s7 + $0x8] sm:$0xff] %v1770
    %1787 = vst [vmem:[%s7 + $0x10] sm:$0xff] %v1771
    %1788 = vst [vmem:[%s7 + $0x18] sm:$0xff] %v1772
    %1789 = vst [vmem:[%s7 + $0x20] sm:$0xff] %v1773
    %1790 = vst [vmem:[%s7 + $0x28] sm:$0xff] %v1774
    %1791 = vst [vmem:[%s7 + $0x30] sm:$0xff] %v1775
    %1792 = vst [vmem:[%s7 + $0x38] sm:$0xff] %v1776
    %1793 = vst [vmem:[%s7 + $0x40] sm:$0xff] %v1777
    %1794 = vst [vmem:[%s7 + $0x48] sm:$0xff] %v1778
    %1795 = vst [vmem:[%s7 + $0x50] sm:$0xff] %v1779
    %1796 = vst [vmem:[%s7 + $0x58] sm:$0xff] %v1780
    %1797 = vst [vmem:[%s7 + $0x60] sm:$0xff] %v1781
    %1798 = vst [vmem:[%s7 + $0x68] sm:$0xff] %v1782
    %1799 = vst [vmem:[%s7 + $0x70] sm:$0xff] %v1783
    %1800 = vst [vmem:[%s7 + $0x78] sm:$0xff] %v1784
    // Predicated region
    $region34: #{pyramid_pooling_forward.1} parent=1 // pred_check
      _
    $region35: #{pyramid_pooling_forward.1} parent=1 // pred_check_branch
      %1802 = sbr.rel (0) target = $region37
    $region36: #{pyramid_pooling_forward.1} parent=1 // pred_region
      _
    $region37: #{pyramid_pooling_forward.1} parent=1 // pred_fallthru
      _
    // Predicated region
    $region38: #{pyramid_pooling_forward.1} parent=1 // pred_check
      _
    $region39: #{pyramid_pooling_forward.1} parent=1 // pred_check_branch
      %1804 = sbr.rel (0) target = $region41
    $region40: #{pyramid_pooling_forward.1} parent=1 // pred_region
      _
    $region41: #{pyramid_pooling_forward.1} parent=1 // pred_fallthru
      _
    %1805 = vsyncpa [#allocation3], 1

</llo_original>
